<compile_context>
chip_gen: v7x
topology: tpu7x:2x2x1
jax: 0.10.0
libtpu: 0.0.40
codegen_flags: <defaults>
</compile_context>

<pallas_src>
import functools

import jax
import jax.numpy as jnp
from jax.experimental import pallas as pl
from jax.experimental.pallas import tpu as pltpu


def _round_up(n, m):
    return ((n + m - 1) // m) * m


def _pad_axis(a, axis, new_size):
    pad = new_size - a.shape[axis]
    if pad <= 0:
        return a
    widths = [(0, 0)] * a.ndim
    widths[axis] = (0, pad)
    return jnp.pad(a, widths)


def _num_tensorcores():
    # v7x has 2 TensorCores per chip (shard the batch grid across them);
    # v5e / v6e have 1 (use a single grid step to minimize per-step overhead).
    try:
        kind = jax.devices()[0].device_kind.lower()
    except Exception:
        return 1
    return 2 if "7" in kind else 1


def mlp_kernel(x_ref, w1_ref, b1_ref, w2_ref, b2_ref, w3_ref, b3_ref, o_ref):
    # Cast the activation tile to bf16 in-kernel (cheap VPU op); weights are
    # pre-cast bf16 at init.  All matmuls accumulate in f32 on the MXU.
    x = x_ref[...].astype(jnp.bfloat16)

    # hidden1 + ReLU (bias add / ReLU in f32)
    h1 = jnp.dot(x, w1_ref[...], preferred_element_type=jnp.float32) + b1_ref[...]
    h1 = jnp.maximum(h1, 0.0)

    # hidden3 + ReLU -- keep h1 in f32 (avoids bf16 double rounding; the
    # 32x32 matmul is tiny, so the f32 MXU passes are negligible).
    h2 = jnp.dot(h1, w2_ref[...].astype(jnp.float32),
                 preferred_element_type=jnp.float32) + b2_ref[...]
    h2 = jnp.maximum(h2, 0.0)

    # output layer: rhs is lane-padded to 128 columns (zeros) at init; compute
    # the padded result, then store only the live D_out columns -> the HBM
    # output stays unpadded (B, D_out).
    y = jnp.dot(h2, w3_ref[...].astype(jnp.float32),
                preferred_element_type=jnp.float32) + b3_ref[...]
    n_out = o_ref.shape[-1]
    o_ref[...] = y[:, :n_out].astype(o_ref.dtype)


def prepare_params(w1_t, b1, w2_t, b2, w3_t, b3):
    """One-time parameter prep, hoisted out of the forward path.

    Weights -> bf16 ([in, out] layout); biases -> f32 (shape (1, out)).
    The output layer's weight/bias are lane-padded to a multiple of 128 so the
    last matmul's N dimension is aligned (padding columns are zeros and are
    sliced off inside the kernel before the store).
    """
    d_out = w3_t.shape[1]
    dout_p = _round_up(d_out, 128)
    return (
        w1_t.astype(jnp.bfloat16),                       # (D_in, H)
        b1.astype(jnp.float32),                          # (1, H)
        w2_t.astype(jnp.bfloat16),                       # (H, H)
        b2.astype(jnp.float32),                          # (1, H)
        _pad_axis(w3_t, 1, dout_p).astype(jnp.bfloat16),  # (H, DOUT_P)
        _pad_axis(b3, 1, dout_p).astype(jnp.float32),     # (1, DOUT_P)
        d_out,
    )


@functools.partial(jax.jit, static_argnames=("d_out", "n_steps"))
def mlp_forward(x, w1, b1, w2, b2, w3p, b3p, *, d_out, n_steps=1):
    B, d_in = x.shape
    hidden = w1.shape[1]
    dout_p = w3p.shape[1]

    # Batch tile: multiple of 8 sublanes; n_steps grid steps (1 on single-TC
    # v5e/v6e, 2 on dual-TC v7x so each TensorCore takes half the batch).
    tb = max(8, _round_up(pl.cdiv(B, n_steps), 8))
    grid = (pl.cdiv(B, tb),)

    def resident(shape):
        # Full-array block with a constant block index -> DMA'd once, stays
        # resident in VMEM across all batch tiles.
        return pl.BlockSpec(shape, lambda i: tuple(0 for _ in shape))

    return pl.pallas_call(
        mlp_kernel,
        out_shape=jax.ShapeDtypeStruct((B, d_out), jnp.float32),
        grid=grid,
        in_specs=[
            pl.BlockSpec((tb, d_in), lambda i: (i, 0)),  # x: batch-tiled, unpadded
            resident((d_in, hidden)),
            resident((1, hidden)),
            resident((hidden, hidden)),
            resident((1, hidden)),
            resident((hidden, dout_p)),
            resident((1, dout_p)),
        ],
        out_specs=pl.BlockSpec((tb, d_out), lambda i: (i, 0)),
        compiler_params=pltpu.CompilerParams(
            dimension_semantics=("parallel",),  # TC sharding on v7x
        ),
    )(x, w1, b1, w2, b2, w3p, b3p)


def init_linear_params(key, in_features, out_features):
    # Deterministic init mimicking torch.nn.Linear's default (uniform +/- 1/sqrt(fan_in)).
    kw, kb = jax.random.split(key)
    bound = 1.0 / jnp.sqrt(jnp.float32(in_features))
    # PyTorch weight is [out, in]; we store it transposed as [in, out] for x @ W.
    w_t = jax.random.uniform(kw, (in_features, out_features), jnp.float32, -bound, bound)
    b = jax.random.uniform(kb, (1, out_features), jnp.float32, -bound, bound)
    return w_t, b


if __name__ == "__main__":
    D_in = 20
    nUnitLayer = 32
    D_out = 2
    B = 512  # exercises the batch grid (1 step on v5e/v6e, 2x256 on v7x)

    key = jax.random.PRNGKey(0)
    kx, k1, k2, k3 = jax.random.split(key, 4)

    x = jax.random.normal(kx, (B, D_in), jnp.float32)
    w1_t, b1 = init_linear_params(k1, D_in, nUnitLayer)
    w2_t, b2 = init_linear_params(k2, nUnitLayer, nUnitLayer)
    w3_t, b3 = init_linear_params(k3, nUnitLayer, D_out)

    # One-time parameter preparation (hoisted out of the per-call path).
    w1p, b1p, w2p, b2p, w3p, b3p, d_out = prepare_params(w1_t, b1, w2_t, b2, w3_t, b3)
    jax.block_until_ready((w1p, b1p, w2p, b2p, w3p, b3p))

    n_steps = _num_tensorcores()

    y = mlp_forward(x, w1p, b1p, w2p, b2p, w3p, b3p, d_out=d_out, n_steps=n_steps)
    jax.block_until_ready(y)

    # Reference check in plain f32 JAX (same math as the PyTorch module).
    h1 = jnp.maximum(x @ w1_t + b1, 0.0)
    h2 = jnp.maximum(h1 @ w2_t + b2, 0.0)
    y_ref = h2 @ w3_t + b3

    assert y.shape == (B, D_out)
    # bf16 x / weights in the first layers -> relaxed tolerance vs f32 reference
    assert jnp.allclose(y, y_ref, atol=3e-2, rtol=3e-2), (
        float(jnp.max(jnp.abs(y - y_ref))))

    print("KERNEL_OK")
</pallas_src>

<mosaic_0001>
module attributes {stable_mosaic.version = 11 : i64} {
  func.func @mlp_kernel(%arg0: i32, %arg1: memref<512x20xf32, #tpu.memory_space<vmem>>, %arg2: memref<20x32xbf16, #tpu.memory_space<vmem>>, %arg3: memref<1x32xf32, #tpu.memory_space<vmem>>, %arg4: memref<32x32xbf16, #tpu.memory_space<vmem>>, %arg5: memref<1x32xf32, #tpu.memory_space<vmem>>, %arg6: memref<32x128xbf16, #tpu.memory_space<vmem>>, %arg7: memref<1x128xf32, #tpu.memory_space<vmem>>, %arg8: memref<512x2xf32, #tpu.memory_space<vmem>>) attributes {dimension_semantics = [#tpu.dimension_semantics<parallel>], iteration_bounds = array<i64: 1>, scalar_prefetch = 0 : i64, scratch_operands = 0 : i64, tpu.core_type = #tpu.core_type<tc>, window_params = [{transform_indices = @transform_0, window_bounds = array<i64: 512, 20>}, {pipeline_mode = #tpu.pipeline_mode<synchronous>, transform_indices = @transform_1, window_bounds = array<i64: 20, 32>}, {pipeline_mode = #tpu.pipeline_mode<synchronous>, transform_indices = @transform_2, window_bounds = array<i64: 1, 32>}, {pipeline_mode = #tpu.pipeline_mode<synchronous>, transform_indices = @transform_3, window_bounds = array<i64: 32, 32>}, {pipeline_mode = #tpu.pipeline_mode<synchronous>, transform_indices = @transform_4, window_bounds = array<i64: 1, 32>}, {pipeline_mode = #tpu.pipeline_mode<synchronous>, transform_indices = @transform_5, window_bounds = array<i64: 32, 128>}, {pipeline_mode = #tpu.pipeline_mode<synchronous>, transform_indices = @transform_6, window_bounds = array<i64: 1, 128>}, {transform_indices = @transform_7, window_bounds = array<i64: 512, 2>}]} {
    %c0 = arith.constant 0 : index
    %c0_0 = arith.constant 0 : index
    %0 = vector.load %arg1[%c0, %c0_0] : memref<512x20xf32, #tpu.memory_space<vmem>>, vector<512x20xf32>
    %1 = arith.truncf %0 : vector<512x20xf32> to vector<512x20xbf16>
    %c0_1 = arith.constant 0 : index
    %c0_2 = arith.constant 0 : index
    %2 = vector.load %arg2[%c0_1, %c0_2] : memref<20x32xbf16, #tpu.memory_space<vmem>>, vector<20x32xbf16>
    %cst = arith.constant dense<0.000000e+00> : vector<512x32xf32>
    %3 = tpu.matmul %1, %2, %cst {dimension_numbers = #tpu.dot_dimension_numbers<[1], [0], [0], [1], [0, 0, 1, 1], [], []>} : vector<512x20xbf16>, vector<20x32xbf16>, vector<512x32xf32> -> vector<512x32xf32>
    %c0_3 = arith.constant 0 : index
    %c0_4 = arith.constant 0 : index
    %4 = vector.load %arg3[%c0_3, %c0_4] : memref<1x32xf32, #tpu.memory_space<vmem>>, vector<1x32xf32>
    %5 = vector.broadcast %4 : vector<1x32xf32> to vector<512x32xf32>
    %6 = arith.addf %3, %5 : vector<512x32xf32>
    %cst_5 = arith.constant 0.000000e+00 : f32
    %7 = vector.broadcast %cst_5 : f32 to vector<512x32xf32>
    %8 = arith.maximumf %6, %7 : vector<512x32xf32>
    %c0_6 = arith.constant 0 : index
    %c0_7 = arith.constant 0 : index
    %9 = vector.load %arg4[%c0_6, %c0_7] : memref<32x32xbf16, #tpu.memory_space<vmem>>, vector<32x32xbf16>
    %10 = arith.extf %9 : vector<32x32xbf16> to vector<32x32xf32>
    %cst_8 = arith.constant dense<0.000000e+00> : vector<512x32xf32>
    %11 = tpu.matmul %8, %10, %cst_8 {dimension_numbers = #tpu.dot_dimension_numbers<[1], [0], [0], [1], [0, 0, 1, 1], [], []>} : vector<512x32xf32>, vector<32x32xf32>, vector<512x32xf32> -> vector<512x32xf32>
    %c0_9 = arith.constant 0 : index
    %c0_10 = arith.constant 0 : index
    %12 = vector.load %arg5[%c0_9, %c0_10] : memref<1x32xf32, #tpu.memory_space<vmem>>, vector<1x32xf32>
    %13 = vector.broadcast %12 : vector<1x32xf32> to vector<512x32xf32>
    %14 = arith.addf %11, %13 : vector<512x32xf32>
    %cst_11 = arith.constant 0.000000e+00 : f32
    %15 = vector.broadcast %cst_11 : f32 to vector<512x32xf32>
    %16 = arith.maximumf %14, %15 : vector<512x32xf32>
    %c0_12 = arith.constant 0 : index
    %c0_13 = arith.constant 0 : index
    %17 = vector.load %arg6[%c0_12, %c0_13] : memref<32x128xbf16, #tpu.memory_space<vmem>>, vector<32x128xbf16>
    %18 = arith.extf %17 : vector<32x128xbf16> to vector<32x128xf32>
    %cst_14 = arith.constant dense<0.000000e+00> : vector<512x128xf32>
    %19 = tpu.matmul %16, %18, %cst_14 {dimension_numbers = #tpu.dot_dimension_numbers<[1], [0], [0], [1], [0, 0, 1, 1], [], []>} : vector<512x32xf32>, vector<32x128xf32>, vector<512x128xf32> -> vector<512x128xf32>
    %c0_15 = arith.constant 0 : index
    %c0_16 = arith.constant 0 : index
    %20 = vector.load %arg7[%c0_15, %c0_16] : memref<1x128xf32, #tpu.memory_space<vmem>>, vector<1x128xf32>
    %21 = vector.broadcast %20 : vector<1x128xf32> to vector<512x128xf32>
    %22 = arith.addf %19, %21 : vector<512x128xf32>
    %23 = vector.extract_strided_slice %22 {offsets = [0, 0], sizes = [512, 2], strides = [1, 1]} : vector<512x128xf32> to vector<512x2xf32>
    %c0_17 = arith.constant 0 : index
    %c0_18 = arith.constant 0 : index
    %24 = vector.load %arg8[%c0_17, %c0_18] : memref<512x2xf32, #tpu.memory_space<vmem>>, vector<512x2xf32>
    tpu.vector_store %arg8[%c0_17, %c0_18], %23 {strides = array<i32>} : memref<512x2xf32, #tpu.memory_space<vmem>>, vector<512x2xf32>,
    return
  }
  func.func @transform_0(%arg0: i32) -> (i32, i32) {
    %c0_i32 = arith.constant 0 : i32
    %c0_i32_0 = arith.constant 0 : i32
    return %arg0, %c0_i32 : i32, i32
  }
  func.func @transform_1(%arg0: i32) -> (i32, i32) {
    %c0_i32 = arith.constant 0 : i32
    %c0_i32_0 = arith.constant 0 : i32
    %c0_i32_1 = arith.constant 0 : i32
    return %c0_i32, %c0_i32_0 : i32, i32
  }
  func.func @transform_2(%arg0: i32) -> (i32, i32) {
    %c0_i32 = arith.constant 0 : i32
    %c0_i32_0 = arith.constant 0 : i32
    %c0_i32_1 = arith.constant 0 : i32
    return %c0_i32, %c0_i32_0 : i32, i32
  }
  func.func @transform_3(%arg0: i32) -> (i32, i32) {
    %c0_i32 = arith.constant 0 : i32
    %c0_i32_0 = arith.constant 0 : i32
    %c0_i32_1 = arith.constant 0 : i32
    return %c0_i32, %c0_i32_0 : i32, i32
  }
  func.func @transform_4(%arg0: i32) -> (i32, i32) {
    %c0_i32 = arith.constant 0 : i32
    %c0_i32_0 = arith.constant 0 : i32
    %c0_i32_1 = arith.constant 0 : i32
    return %c0_i32, %c0_i32_0 : i32, i32
  }
  func.func @transform_5(%arg0: i32) -> (i32, i32) {
    %c0_i32 = arith.constant 0 : i32
    %c0_i32_0 = arith.constant 0 : i32
    %c0_i32_1 = arith.constant 0 : i32
    return %c0_i32, %c0_i32_0 : i32, i32
  }
  func.func @transform_6(%arg0: i32) -> (i32, i32) {
    %c0_i32 = arith.constant 0 : i32
    %c0_i32_0 = arith.constant 0 : i32
    %c0_i32_1 = arith.constant 0 : i32
    return %c0_i32, %c0_i32_0 : i32, i32
  }
  func.func @transform_7(%arg0: i32) -> (i32, i32) {
    %c0_i32 = arith.constant 0 : i32
    %c0_i32_0 = arith.constant 0 : i32
    return %arg0, %c0_i32 : i32, i32
  }
}

</mosaic_0001>

<llo_original>
// kernel: mlp_forward.1
$region0: #{mlp_forward.1}
  #allocation0 [shape = 'u32[]', space=smem, size = 0x4, offset = 0x4, fixed_abs, tag = 'smem constant byte address 0x4 - core index']
  #allocation1 [shape = 'u32[144,128]{1,0:T(1,128)}', space=vmem, size = 0x12000, scoped, tag = 'internal scratch']
  %s0 = inlined_call_operand.vmem [shape: f32[512,20], index: 0, kind: input, shape index: {}]
  %s1 = inlined_call_operand.vmem [shape: bf16[20,32], index: 1, kind: input, shape index: {}]
  %s2 = inlined_call_operand.vmem [shape: f32[1,32], index: 2, kind: input, shape index: {}]
  %s3 = inlined_call_operand.vmem [shape: bf16[32,32], index: 3, kind: input, shape index: {}]
  %s4 = inlined_call_operand.vmem [shape: f32[1,32], index: 4, kind: input, shape index: {}]
  %s5 = inlined_call_operand.vmem [shape: bf16[32,128], index: 5, kind: input, shape index: {}]
  %s6 = inlined_call_operand.vmem [shape: f32[1,128], index: 6, kind: input, shape index: {}]
  %s7 = inlined_call_operand.vmem [shape: f32[512,2], index: 7, kind: output, shape index: {}]
  %s8 = sld [smem:[#allocation0]]
  $region38: #{mlp_forward.1} parent=0
    _
  %s10 = ssub.s32 1, %s8
  %s11 = scalar_select 0, %s10, %s8
  // Predicated region
  $region2: #{mlp_forward.1} parent=0 // pred_check
    _
  $region3: #{mlp_forward.1} parent=0 // pred_check_branch
    %13 = sbr.rel (0) target = $region5
  $region4: #{mlp_forward.1} parent=0 // pred_region
    _
  $region5: #{mlp_forward.1} parent=0 // pred_fallthru
    _
  // Predicated region
  $region6: #{mlp_forward.1} parent=0 // pred_check
    _
  $region7: #{mlp_forward.1} parent=0 // pred_check_branch
    %15 = sbr.rel (0) target = $region9
  $region8: #{mlp_forward.1} parent=0 // pred_region
    _
  $region9: #{mlp_forward.1} parent=0 // pred_fallthru
    _
  // Predicated region
  $region10: #{mlp_forward.1} parent=0 // pred_check
    _
  $region11: #{mlp_forward.1} parent=0 // pred_check_branch
    %17 = sbr.rel (0) target = $region13
  $region12: #{mlp_forward.1} parent=0 // pred_region
    _
  $region13: #{mlp_forward.1} parent=0 // pred_fallthru
    _
  // Predicated region
  $region14: #{mlp_forward.1} parent=0 // pred_check
    _
  $region15: #{mlp_forward.1} parent=0 // pred_check_branch
    %19 = sbr.rel (0) target = $region17
  $region16: #{mlp_forward.1} parent=0 // pred_region
    _
  $region17: #{mlp_forward.1} parent=0 // pred_fallthru
    _
  // Predicated region
  $region18: #{mlp_forward.1} parent=0 // pred_check
    _
  $region19: #{mlp_forward.1} parent=0 // pred_check_branch
    %21 = sbr.rel (0) target = $region21
  $region20: #{mlp_forward.1} parent=0 // pred_region
    _
  $region21: #{mlp_forward.1} parent=0 // pred_fallthru
    _
  // Predicated region
  $region22: #{mlp_forward.1} parent=0 // pred_check
    _
  $region23: #{mlp_forward.1} parent=0 // pred_check_branch
    %23 = sbr.rel (0) target = $region25
  $region24: #{mlp_forward.1} parent=0 // pred_region
    _
  $region25: #{mlp_forward.1} parent=0 // pred_fallthru
    _
  // Predicated region
  $region26: #{mlp_forward.1} parent=0 // pred_check
    _
  $region27: #{mlp_forward.1} parent=0 // pred_check_branch
    %25 = sbr.rel (0) target = $region29
  $region28: #{mlp_forward.1} parent=0 // pred_region
    _
  $region29: #{mlp_forward.1} parent=0 // pred_fallthru
    _
  %v27 = vld [vmem:[%s0] sm:$0xff]
  %v28 = vld [vmem:[%s0 + $0x8] sm:$0xff]
  %v29 = vld [vmem:[%s0 + $0x10] sm:$0xff]
  %v30 = vld [vmem:[%s0 + $0x18] sm:$0xff]
  %v31 = vld [vmem:[%s0 + $0x20] sm:$0xff]
  %v32 = vld [vmem:[%s0 + $0x28] sm:$0xff]
  %v33 = vld [vmem:[%s0 + $0x30] sm:$0xff]
  %v34 = vld [vmem:[%s0 + $0x38] sm:$0xff]
  %v35 = vld [vmem:[%s0 + $0x40] sm:$0xff]
  %v36 = vld [vmem:[%s0 + $0x48] sm:$0xff]
  %v37 = vld [vmem:[%s0 + $0x50] sm:$0xff]
  %v38 = vld [vmem:[%s0 + $0x58] sm:$0xff]
  %v39 = vld [vmem:[%s0 + $0x60] sm:$0xff]
  %v40 = vld [vmem:[%s0 + $0x68] sm:$0xff]
  %v41 = vld [vmem:[%s0 + $0x70] sm:$0xff]
  %v42 = vld [vmem:[%s0 + $0x78] sm:$0xff]
  %v43 = vld [vmem:[%s0 + $0x80] sm:$0xff]
  %v44 = vld [vmem:[%s0 + $0x88] sm:$0xff]
  %v45 = vld [vmem:[%s0 + $0x90] sm:$0xff]
  %v46 = vld [vmem:[%s0 + $0x98] sm:$0xff]
  %v47 = vld [vmem:[%s0 + $0xa0] sm:$0xff]
  %v48 = vld [vmem:[%s0 + $0xa8] sm:$0xff]
  %v49 = vld [vmem:[%s0 + $0xb0] sm:$0xff]
  %v50 = vld [vmem:[%s0 + $0xb8] sm:$0xff]
  %v51 = vld [vmem:[%s0 + $0xc0] sm:$0xff]
  %v52 = vld [vmem:[%s0 + $0xc8] sm:$0xff]
  %v53 = vld [vmem:[%s0 + $0xd0] sm:$0xff]
  %v54 = vld [vmem:[%s0 + $0xd8] sm:$0xff]
  %v55 = vld [vmem:[%s0 + $0xe0] sm:$0xff]
  %v56 = vld [vmem:[%s0 + $0xe8] sm:$0xff]
  %v57 = vld [vmem:[%s0 + $0xf0] sm:$0xff]
  %v58 = vld [vmem:[%s0 + $0xf8] sm:$0xff]
  %v59 = vld [vmem:[%s0 + $0x100] sm:$0xff]
  %v60 = vld [vmem:[%s0 + $0x108] sm:$0xff]
  %v61 = vld [vmem:[%s0 + $0x110] sm:$0xff]
  %v62 = vld [vmem:[%s0 + $0x118] sm:$0xff]
  %v63 = vld [vmem:[%s0 + $0x120] sm:$0xff]
  %v64 = vld [vmem:[%s0 + $0x128] sm:$0xff]
  %v65 = vld [vmem:[%s0 + $0x130] sm:$0xff]
  %v66 = vld [vmem:[%s0 + $0x138] sm:$0xff]
  %v67 = vld [vmem:[%s0 + $0x140] sm:$0xff]
  %v68 = vld [vmem:[%s0 + $0x148] sm:$0xff]
  %v69 = vld [vmem:[%s0 + $0x150] sm:$0xff]
  %v70 = vld [vmem:[%s0 + $0x158] sm:$0xff]
  %v71 = vld [vmem:[%s0 + $0x160] sm:$0xff]
  %v72 = vld [vmem:[%s0 + $0x168] sm:$0xff]
  %v73 = vld [vmem:[%s0 + $0x170] sm:$0xff]
  %v74 = vld [vmem:[%s0 + $0x178] sm:$0xff]
  %v75 = vld [vmem:[%s0 + $0x180] sm:$0xff]
  %v76 = vld [vmem:[%s0 + $0x188] sm:$0xff]
  %v77 = vld [vmem:[%s0 + $0x190] sm:$0xff]
  %v78 = vld [vmem:[%s0 + $0x198] sm:$0xff]
  %v79 = vld [vmem:[%s0 + $0x1a0] sm:$0xff]
  %v80 = vld [vmem:[%s0 + $0x1a8] sm:$0xff]
  %v81 = vld [vmem:[%s0 + $0x1b0] sm:$0xff]
  %v82 = vld [vmem:[%s0 + $0x1b8] sm:$0xff]
  %v83 = vld [vmem:[%s0 + $0x1c0] sm:$0xff]
  %v84 = vld [vmem:[%s0 + $0x1c8] sm:$0xff]
  %v85 = vld [vmem:[%s0 + $0x1d0] sm:$0xff]
  %v86 = vld [vmem:[%s0 + $0x1d8] sm:$0xff]
  %v87 = vld [vmem:[%s0 + $0x1e0] sm:$0xff]
  %v88 = vld [vmem:[%s0 + $0x1e8] sm:$0xff]
  %v89 = vld [vmem:[%s0 + $0x1f0] sm:$0xff]
  %v90 = vld [vmem:[%s0 + $0x1f8] sm:$0xff]
  %v91 = vpack.c.bf16 %v28, %v27
  %v92 = vpack.c.bf16 %v30, %v29
  %v93 = vpack.c.bf16 %v32, %v31
  %v94 = vpack.c.bf16 %v34, %v33
  %v95 = vpack.c.bf16 %v36, %v35
  %v96 = vpack.c.bf16 %v38, %v37
  %v97 = vpack.c.bf16 %v40, %v39
  %v98 = vpack.c.bf16 %v42, %v41
  %v99 = vpack.c.bf16 %v44, %v43
  %v100 = vpack.c.bf16 %v46, %v45
  %v101 = vpack.c.bf16 %v48, %v47
  %v102 = vpack.c.bf16 %v50, %v49
  %v103 = vpack.c.bf16 %v52, %v51
  %v104 = vpack.c.bf16 %v54, %v53
  %v105 = vpack.c.bf16 %v56, %v55
  %v106 = vpack.c.bf16 %v58, %v57
  %v107 = vpack.c.bf16 %v60, %v59
  %v108 = vpack.c.bf16 %v62, %v61
  %v109 = vpack.c.bf16 %v64, %v63
  %v110 = vpack.c.bf16 %v66, %v65
  %v111 = vpack.c.bf16 %v68, %v67
  %v112 = vpack.c.bf16 %v70, %v69
  %v113 = vpack.c.bf16 %v72, %v71
  %v114 = vpack.c.bf16 %v74, %v73
  %v115 = vpack.c.bf16 %v76, %v75
  %v116 = vpack.c.bf16 %v78, %v77
  %v117 = vpack.c.bf16 %v80, %v79
  %v118 = vpack.c.bf16 %v82, %v81
  %v119 = vpack.c.bf16 %v84, %v83
  %v120 = vpack.c.bf16 %v86, %v85
  %v121 = vpack.c.bf16 %v88, %v87
  %v122 = vpack.c.bf16 %v90, %v89
  %v123 = vld [vmem:[%s1] sm:$0xf]
  %v124 = vld [vmem:[%s1 + $0x4] sm:$0xf]
  %v125 = vld [vmem:[%s1 + $0x8] sm:$0x3]
  %v126 = vld [vmem:[%s2] sm:$0x1]
  %v128 = vlaneseq
  %v129 = vshrl.u32 %v128, 7
  %v130 = vsub.s32 0, %v129
  %v131 = vrot.slane %v126, %v130
  %v136 = vunpack.c.l.b16 %v123
  %v137 = vunpack.c.l.b16 %v124
  %v138 = vunpack.c.l.b16 %v125
  %v139 = vpack.c.b16 %v137, %v136
  %v140 = vpack.c.b16 %v138, %v138
  %vm142 = vcmask 162816
  %v144 = vsel %vm142, %v91, 0
  %v147 = vsel %vm142, %v92, 0
  %v150 = vsel %vm142, %v93, 0
  %v153 = vsel %vm142, %v94, 0
  %v156 = vsel %vm142, %v95, 0
  %v159 = vsel %vm142, %v96, 0
  %v162 = vsel %vm142, %v97, 0
  %v165 = vsel %vm142, %v98, 0
  %v168 = vsel %vm142, %v99, 0
  %v171 = vsel %vm142, %v100, 0
  %v174 = vsel %vm142, %v101, 0
  %v177 = vsel %vm142, %v102, 0
  %v180 = vsel %vm142, %v103, 0
  %v183 = vsel %vm142, %v104, 0
  %v186 = vsel %vm142, %v105, 0
  %v189 = vsel %vm142, %v106, 0
  %v192 = vsel %vm142, %v107, 0
  %v195 = vsel %vm142, %v108, 0
  %v198 = vsel %vm142, %v109, 0
  %v201 = vsel %vm142, %v110, 0
  %v204 = vsel %vm142, %v111, 0
  %v207 = vsel %vm142, %v112, 0
  %v210 = vsel %vm142, %v113, 0
  %v213 = vsel %vm142, %v114, 0
  %v216 = vsel %vm142, %v115, 0
  %v219 = vsel %vm142, %v116, 0
  %v222 = vsel %vm142, %v117, 0
  %v225 = vsel %vm142, %v118, 0
  %v228 = vsel %vm142, %v119, 0
  %v231 = vsel %vm142, %v120, 0
  %v234 = vsel %vm142, %v121, 0
  %v237 = vsel %vm142, %v122, 0
  %vm239 = vcmask 1041408
  %v241 = vsel %vm239, %v140, 0
  %243 = vmatprep.subr.bf16.mxu0 0
  %244 = vmatpush1.bf16.msra.mxu0 %v139
  %245 = vmatprep.subr.bf16.mxu0 0
  %246 = vmatpush1.bf16.msra.mxu0 %v241
  %247 = vmatprep.subr.bf16.mxu0 0
  %248 = vmatpush1.bf16.msra.mxu0 0
  %249 = vmatprep.subr.bf16.mxu0 0
  %250 = vmatpush1.bf16.msra.mxu0 0
  %251 = vmatprep.subr.bf16.mxu0 0
  %252 = vmatpush1.bf16.msra.mxu0 0
  %253 = vmatprep.subr.bf16.mxu0 0
  %254 = vmatpush1.bf16.msra.mxu0 0
  %255 = vmatprep.subr.bf16.mxu0 0
  %256 = vmatpush1.bf16.msra.mxu0 0
  %257 = vmatprep.subr.bf16.mxu0 0
  %258 = vmatpush1.bf16.msra.mxu0 0
  %259 = vmatprep.subr.bf16.mxu0 0
  %260 = vmatpush1.bf16.msra.mxu0 0
  %261 = vmatprep.subr.bf16.mxu0 0
  %262 = vmatpush1.bf16.msra.mxu0 0
  %263 = vmatprep.subr.bf16.mxu0 0
  %264 = vmatpush1.bf16.msra.mxu0 0
  %265 = vmatprep.subr.bf16.mxu0 0
  %266 = vmatpush1.bf16.msra.mxu0 0
  %267 = vmatprep.subr.bf16.mxu0 0
  %268 = vmatpush1.bf16.msra.mxu0 0
  %269 = vmatprep.subr.bf16.mxu0 0
  %270 = vmatpush1.bf16.msra.mxu0 0
  %271 = vmatprep.subr.bf16.mxu0 0
  %272 = vmatpush1.bf16.msra.mxu0 0
  %273 = vmatprep.subr.bf16.mxu0 0
  %274 = vmatpush1.bf16.msra.mxu0 0
  %275 = vmatprep.mubr.bf16.mxu0 0
  %276 = vmatmul.mubr.bf16.gmra.mrb[0].mxu0 %v144
  %v277 = vpop.f32.mrb[0].mxu0
  %v278 = vadd.f32 %v131, %v277
  %v279 = vpop.f32.mrb[0].mxu0
  %v280 = vpop.f32.mrb[0].mxu0
  %v281 = vadd.f32 %v131, %v280
  %v282 = vpop.f32.mrb[0].mxu0
  %283 = vmatprep.mubr.bf16.mxu0 0
  %284 = vmatmul.mubr.bf16.gmra.mrb[0].mxu0 %v147
  %v285 = vpop.f32.mrb[0].mxu0
  %v286 = vadd.f32 %v131, %v285
  %v287 = vpop.f32.mrb[0].mxu0
  %v288 = vpop.f32.mrb[0].mxu0
  %v289 = vadd.f32 %v131, %v288
  %v290 = vpop.f32.mrb[0].mxu0
  %291 = vmatprep.mubr.bf16.mxu0 0
  %292 = vmatmul.mubr.bf16.gmra.mrb[0].mxu0 %v150
  %v293 = vpop.f32.mrb[0].mxu0
  %v294 = vadd.f32 %v131, %v293
  %v295 = vpop.f32.mrb[0].mxu0
  %v296 = vpop.f32.mrb[0].mxu0
  %v297 = vadd.f32 %v131, %v296
  %v298 = vpop.f32.mrb[0].mxu0
  %299 = vmatprep.mubr.bf16.mxu0 0
  %300 = vmatmul.mubr.bf16.gmra.mrb[0].mxu0 %v153
  %v301 = vpop.f32.mrb[0].mxu0
  %v302 = vadd.f32 %v131, %v301
  %v303 = vpop.f32.mrb[0].mxu0
  %v304 = vpop.f32.mrb[0].mxu0
  %v305 = vadd.f32 %v131, %v304
  %v306 = vpop.f32.mrb[0].mxu0
  %307 = vmatprep.mubr.bf16.mxu0 0
  %308 = vmatmul.mubr.bf16.gmra.mrb[0].mxu0 %v156
  %v309 = vpop.f32.mrb[0].mxu0
  %v310 = vadd.f32 %v131, %v309
  %v311 = vpop.f32.mrb[0].mxu0
  %v312 = vpop.f32.mrb[0].mxu0
  %v313 = vadd.f32 %v131, %v312
  %v314 = vpop.f32.mrb[0].mxu0
  %315 = vmatprep.mubr.bf16.mxu0 0
  %316 = vmatmul.mubr.bf16.gmra.mrb[0].mxu0 %v159
  %v317 = vpop.f32.mrb[0].mxu0
  %v318 = vadd.f32 %v131, %v317
  %v319 = vpop.f32.mrb[0].mxu0
  %v320 = vpop.f32.mrb[0].mxu0
  %v321 = vadd.f32 %v131, %v320
  %v322 = vpop.f32.mrb[0].mxu0
  %323 = vmatprep.mubr.bf16.mxu0 0
  %324 = vmatmul.mubr.bf16.gmra.mrb[0].mxu0 %v162
  %v325 = vpop.f32.mrb[0].mxu0
  %v326 = vadd.f32 %v131, %v325
  %v327 = vpop.f32.mrb[0].mxu0
  %v328 = vpop.f32.mrb[0].mxu0
  %v329 = vadd.f32 %v131, %v328
  %v330 = vpop.f32.mrb[0].mxu0
  %331 = vmatprep.mubr.bf16.mxu0 0
  %332 = vmatmul.mubr.bf16.gmra.mrb[0].mxu0 %v165
  %v333 = vpop.f32.mrb[0].mxu0
  %v334 = vadd.f32 %v131, %v333
  %v335 = vpop.f32.mrb[0].mxu0
  %v336 = vpop.f32.mrb[0].mxu0
  %v337 = vadd.f32 %v131, %v336
  %v338 = vpop.f32.mrb[0].mxu0
  %339 = vmatprep.mubr.bf16.mxu0 0
  %340 = vmatmul.mubr.bf16.gmra.mrb[0].mxu0 %v168
  %v341 = vpop.f32.mrb[0].mxu0
  %v342 = vadd.f32 %v131, %v341
  %v343 = vpop.f32.mrb[0].mxu0
  %v344 = vpop.f32.mrb[0].mxu0
  %v345 = vadd.f32 %v131, %v344
  %v346 = vpop.f32.mrb[0].mxu0
  %347 = vmatprep.mubr.bf16.mxu0 0
  %348 = vmatmul.mubr.bf16.gmra.mrb[0].mxu0 %v171
  %v349 = vpop.f32.mrb[0].mxu0
  %v350 = vadd.f32 %v131, %v349
  %v351 = vpop.f32.mrb[0].mxu0
  %v352 = vpop.f32.mrb[0].mxu0
  %v353 = vadd.f32 %v131, %v352
  %v354 = vpop.f32.mrb[0].mxu0
  %355 = vmatprep.mubr.bf16.mxu0 0
  %356 = vmatmul.mubr.bf16.gmra.mrb[0].mxu0 %v174
  %v357 = vpop.f32.mrb[0].mxu0
  %v358 = vadd.f32 %v131, %v357
  %v359 = vpop.f32.mrb[0].mxu0
  %v360 = vpop.f32.mrb[0].mxu0
  %v361 = vadd.f32 %v131, %v360
  %v362 = vpop.f32.mrb[0].mxu0
  %363 = vmatprep.mubr.bf16.mxu0 0
  %364 = vmatmul.mubr.bf16.gmra.mrb[0].mxu0 %v177
  %v365 = vpop.f32.mrb[0].mxu0
  %v366 = vadd.f32 %v131, %v365
  %v367 = vpop.f32.mrb[0].mxu0
  %v368 = vpop.f32.mrb[0].mxu0
  %v369 = vadd.f32 %v131, %v368
  %v370 = vpop.f32.mrb[0].mxu0
  %371 = vmatprep.mubr.bf16.mxu0 0
  %372 = vmatmul.mubr.bf16.gmra.mrb[0].mxu0 %v180
  %v373 = vpop.f32.mrb[0].mxu0
  %v374 = vadd.f32 %v131, %v373
  %v375 = vpop.f32.mrb[0].mxu0
  %v376 = vpop.f32.mrb[0].mxu0
  %v377 = vadd.f32 %v131, %v376
  %v378 = vpop.f32.mrb[0].mxu0
  %379 = vmatprep.mubr.bf16.mxu0 0
  %380 = vmatmul.mubr.bf16.gmra.mrb[0].mxu0 %v183
  %v381 = vpop.f32.mrb[0].mxu0
  %v382 = vadd.f32 %v131, %v381
  %v383 = vpop.f32.mrb[0].mxu0
  %v384 = vpop.f32.mrb[0].mxu0
  %v385 = vadd.f32 %v131, %v384
  %v386 = vpop.f32.mrb[0].mxu0
  %387 = vmatprep.mubr.bf16.mxu0 0
  %388 = vmatmul.mubr.bf16.gmra.mrb[0].mxu0 %v186
  %v389 = vpop.f32.mrb[0].mxu0
  %v390 = vadd.f32 %v131, %v389
  %v391 = vpop.f32.mrb[0].mxu0
  %v392 = vpop.f32.mrb[0].mxu0
  %v393 = vadd.f32 %v131, %v392
  %v394 = vpop.f32.mrb[0].mxu0
  %395 = vmatprep.mubr.bf16.mxu0 0
  %396 = vmatmul.mubr.bf16.gmra.mrb[0].mxu0 %v189
  %v397 = vpop.f32.mrb[0].mxu0
  %v398 = vadd.f32 %v131, %v397
  %v399 = vpop.f32.mrb[0].mxu0
  %v400 = vpop.f32.mrb[0].mxu0
  %v401 = vadd.f32 %v131, %v400
  %v402 = vpop.f32.mrb[0].mxu0
  %403 = vmatprep.mubr.bf16.mxu0 0
  %404 = vmatmul.mubr.bf16.gmra.mrb[0].mxu0 %v192
  %v405 = vpop.f32.mrb[0].mxu0
  %v406 = vadd.f32 %v131, %v405
  %v407 = vpop.f32.mrb[0].mxu0
  %v408 = vpop.f32.mrb[0].mxu0
  %v409 = vadd.f32 %v131, %v408
  %v410 = vpop.f32.mrb[0].mxu0
  %411 = vmatprep.mubr.bf16.mxu0 0
  %412 = vmatmul.mubr.bf16.gmra.mrb[0].mxu0 %v195
  %v413 = vpop.f32.mrb[0].mxu0
  %v414 = vadd.f32 %v131, %v413
  %v415 = vpop.f32.mrb[0].mxu0
  %v416 = vpop.f32.mrb[0].mxu0
  %v417 = vadd.f32 %v131, %v416
  %v418 = vpop.f32.mrb[0].mxu0
  %419 = vmatprep.mubr.bf16.mxu0 0
  %420 = vmatmul.mubr.bf16.gmra.mrb[0].mxu0 %v198
  %v421 = vpop.f32.mrb[0].mxu0
  %v422 = vadd.f32 %v131, %v421
  %v423 = vpop.f32.mrb[0].mxu0
  %v424 = vpop.f32.mrb[0].mxu0
  %v425 = vadd.f32 %v131, %v424
  %v426 = vpop.f32.mrb[0].mxu0
  %427 = vmatprep.mubr.bf16.mxu0 0
  %428 = vmatmul.mubr.bf16.gmra.mrb[0].mxu0 %v201
  %v429 = vpop.f32.mrb[0].mxu0
  %v430 = vadd.f32 %v131, %v429
  %v431 = vpop.f32.mrb[0].mxu0
  %v432 = vpop.f32.mrb[0].mxu0
  %v433 = vadd.f32 %v131, %v432
  %v434 = vpop.f32.mrb[0].mxu0
  %435 = vmatprep.mubr.bf16.mxu0 0
  %436 = vmatmul.mubr.bf16.gmra.mrb[0].mxu0 %v204
  %v437 = vpop.f32.mrb[0].mxu0
  %v438 = vadd.f32 %v131, %v437
  %v439 = vpop.f32.mrb[0].mxu0
  %v440 = vpop.f32.mrb[0].mxu0
  %v441 = vadd.f32 %v131, %v440
  %v442 = vpop.f32.mrb[0].mxu0
  %443 = vmatprep.mubr.bf16.mxu0 0
  %444 = vmatmul.mubr.bf16.gmra.mrb[0].mxu0 %v207
  %v445 = vpop.f32.mrb[0].mxu0
  %v446 = vadd.f32 %v131, %v445
  %v447 = vpop.f32.mrb[0].mxu0
  %v448 = vpop.f32.mrb[0].mxu0
  %v449 = vadd.f32 %v131, %v448
  %v450 = vpop.f32.mrb[0].mxu0
  %451 = vmatprep.mubr.bf16.mxu0 0
  %452 = vmatmul.mubr.bf16.gmra.mrb[0].mxu0 %v210
  %v453 = vpop.f32.mrb[0].mxu0
  %v454 = vadd.f32 %v131, %v453
  %v455 = vpop.f32.mrb[0].mxu0
  %v456 = vpop.f32.mrb[0].mxu0
  %v457 = vadd.f32 %v131, %v456
  %v458 = vpop.f32.mrb[0].mxu0
  %459 = vmatprep.mubr.bf16.mxu0 0
  %460 = vmatmul.mubr.bf16.gmra.mrb[0].mxu0 %v213
  %v461 = vpop.f32.mrb[0].mxu0
  %v462 = vadd.f32 %v131, %v461
  %v463 = vpop.f32.mrb[0].mxu0
  %v464 = vpop.f32.mrb[0].mxu0
  %v465 = vadd.f32 %v131, %v464
  %v466 = vpop.f32.mrb[0].mxu0
  %467 = vmatprep.mubr.bf16.mxu0 0
  %468 = vmatmul.mubr.bf16.gmra.mrb[0].mxu0 %v216
  %v469 = vpop.f32.mrb[0].mxu0
  %v470 = vadd.f32 %v131, %v469
  %v471 = vpop.f32.mrb[0].mxu0
  %v472 = vpop.f32.mrb[0].mxu0
  %v473 = vadd.f32 %v131, %v472
  %v474 = vpop.f32.mrb[0].mxu0
  %475 = vmatprep.mubr.bf16.mxu0 0
  %476 = vmatmul.mubr.bf16.gmra.mrb[0].mxu0 %v219
  %v477 = vpop.f32.mrb[0].mxu0
  %v478 = vadd.f32 %v131, %v477
  %v479 = vpop.f32.mrb[0].mxu0
  %v480 = vpop.f32.mrb[0].mxu0
  %v481 = vadd.f32 %v131, %v480
  %v482 = vpop.f32.mrb[0].mxu0
  %483 = vmatprep.mubr.bf16.mxu0 0
  %484 = vmatmul.mubr.bf16.gmra.mrb[0].mxu0 %v222
  %v485 = vpop.f32.mrb[0].mxu0
  %v486 = vadd.f32 %v131, %v485
  %v487 = vpop.f32.mrb[0].mxu0
  %v488 = vpop.f32.mrb[0].mxu0
  %v489 = vadd.f32 %v131, %v488
  %v490 = vpop.f32.mrb[0].mxu0
  %491 = vmatprep.mubr.bf16.mxu0 0
  %492 = vmatmul.mubr.bf16.gmra.mrb[0].mxu0 %v225
  %v493 = vpop.f32.mrb[0].mxu0
  %v494 = vadd.f32 %v131, %v493
  %v495 = vpop.f32.mrb[0].mxu0
  %v496 = vpop.f32.mrb[0].mxu0
  %v497 = vadd.f32 %v131, %v496
  %v498 = vpop.f32.mrb[0].mxu0
  %499 = vmatprep.mubr.bf16.mxu0 0
  %500 = vmatmul.mubr.bf16.gmra.mrb[0].mxu0 %v228
  %v501 = vpop.f32.mrb[0].mxu0
  %v502 = vadd.f32 %v131, %v501
  %v503 = vpop.f32.mrb[0].mxu0
  %v504 = vpop.f32.mrb[0].mxu0
  %v505 = vadd.f32 %v131, %v504
  %v506 = vpop.f32.mrb[0].mxu0
  %507 = vmatprep.mubr.bf16.mxu0 0
  %508 = vmatmul.mubr.bf16.gmra.mrb[0].mxu0 %v231
  %v509 = vpop.f32.mrb[0].mxu0
  %v510 = vadd.f32 %v131, %v509
  %v511 = vpop.f32.mrb[0].mxu0
  %v512 = vpop.f32.mrb[0].mxu0
  %v513 = vadd.f32 %v131, %v512
  %v514 = vpop.f32.mrb[0].mxu0
  %515 = vmatprep.mubr.bf16.mxu0 0
  %516 = vmatmul.mubr.bf16.gmra.mrb[0].mxu0 %v234
  %v517 = vpop.f32.mrb[0].mxu0
  %v518 = vadd.f32 %v131, %v517
  %v519 = vpop.f32.mrb[0].mxu0
  %v520 = vpop.f32.mrb[0].mxu0
  %v521 = vadd.f32 %v131, %v520
  %v522 = vpop.f32.mrb[0].mxu0
  %523 = vmatprep.mubr.bf16.mxu0 0
  %524 = vmatmul.mubr.bf16.gmra.mrb[0].mxu0 %v237
  %v525 = vpop.f32.mrb[0].mxu0
  %v526 = vadd.f32 %v131, %v525
  %v527 = vpop.f32.mrb[0].mxu0
  %v528 = vpop.f32.mrb[0].mxu0
  %v529 = vadd.f32 %v131, %v528
  %v530 = vpop.f32.mrb[0].mxu0
  %531 = vdwg.mxu0
  %v532 = vmax.f32 %v278, 0.0
  %v533 = vmax.f32 %v281, 0.0
  %v534 = vmax.f32 %v286, 0.0
  %v535 = vmax.f32 %v289, 0.0
  %v536 = vmax.f32 %v294, 0.0
  %v537 = vmax.f32 %v297, 0.0
  %v538 = vmax.f32 %v302, 0.0
  %v539 = vmax.f32 %v305, 0.0
  %v540 = vmax.f32 %v310, 0.0
  %v541 = vmax.f32 %v313, 0.0
  %v542 = vmax.f32 %v318, 0.0
  %v543 = vmax.f32 %v321, 0.0
  %v544 = vmax.f32 %v326, 0.0
  %v545 = vmax.f32 %v329, 0.0
  %v546 = vmax.f32 %v334, 0.0
  %v547 = vmax.f32 %v337, 0.0
  %v548 = vmax.f32 %v342, 0.0
  %v549 = vmax.f32 %v345, 0.0
  %v550 = vmax.f32 %v350, 0.0
  %v551 = vmax.f32 %v353, 0.0
  %v552 = vmax.f32 %v358, 0.0
  %v553 = vmax.f32 %v361, 0.0
  %v554 = vmax.f32 %v366, 0.0
  %v555 = vmax.f32 %v369, 0.0
  %v556 = vmax.f32 %v374, 0.0
  %v557 = vmax.f32 %v377, 0.0
  %v558 = vmax.f32 %v382, 0.0
  %v559 = vmax.f32 %v385, 0.0
  %v560 = vmax.f32 %v390, 0.0
  %v561 = vmax.f32 %v393, 0.0
  %v562 = vmax.f32 %v398, 0.0
  %v563 = vmax.f32 %v401, 0.0
  %v564 = vmax.f32 %v406, 0.0
  %v565 = vmax.f32 %v409, 0.0
  %v566 = vmax.f32 %v414, 0.0
  %v567 = vmax.f32 %v417, 0.0
  %v568 = vmax.f32 %v422, 0.0
  %v569 = vmax.f32 %v425, 0.0
  %v570 = vmax.f32 %v430, 0.0
  %v571 = vmax.f32 %v433, 0.0
  %v572 = vmax.f32 %v438, 0.0
  %v573 = vmax.f32 %v441, 0.0
  %v574 = vmax.f32 %v446, 0.0
  %v575 = vmax.f32 %v449, 0.0
  %v576 = vmax.f32 %v454, 0.0
  %v577 = vmax.f32 %v457, 0.0
  %v578 = vmax.f32 %v462, 0.0
  %v579 = vmax.f32 %v465, 0.0
  %v580 = vmax.f32 %v470, 0.0
  %v581 = vmax.f32 %v473, 0.0
  %v582 = vmax.f32 %v478, 0.0
  %v583 = vmax.f32 %v481, 0.0
  %v584 = vmax.f32 %v486, 0.0
  %v585 = vmax.f32 %v489, 0.0
  %v586 = vmax.f32 %v494, 0.0
  %v587 = vmax.f32 %v497, 0.0
  %v588 = vmax.f32 %v502, 0.0
  %v589 = vmax.f32 %v505, 0.0
  %v590 = vmax.f32 %v510, 0.0
  %v591 = vmax.f32 %v513, 0.0
  %v592 = vmax.f32 %v518, 0.0
  %v593 = vmax.f32 %v521, 0.0
  %v594 = vmax.f32 %v526, 0.0
  %v595 = vmax.f32 %v529, 0.0
  %v596 = vld [vmem:[%s3] sm:$0xf]
  %v597 = vld [vmem:[%s3 + $0x4] sm:$0xf]
  %v598 = vld [vmem:[%s3 + $0x8] sm:$0xf]
  %v599 = vld [vmem:[%s3 + $0xc] sm:$0xf]
  %v600 = vunpack.c.l.bf16 %v596
  %v601 = vunpack.c.l.bf16 %v597
  %v602 = vunpack.c.l.bf16 %v598
  %v603 = vunpack.c.l.bf16 %v599
  %v604 = vld [vmem:[%s4] sm:$0x1]
  %v606 = vlaneseq
  %v607 = vshrl.u32 %v606, 7
  %v608 = vsub.s32 0, %v607
  %v609 = vrot.slane %v604, %v608
  %vm611 = vcmask 261120
  %v613 = vsel %vm611, %v532, 0
  %v616 = vsel %vm611, %v533, 0
  %v619 = vsel %vm611, %v534, 0
  %v622 = vsel %vm611, %v535, 0
  %v625 = vsel %vm611, %v536, 0
  %v628 = vsel %vm611, %v537, 0
  %v631 = vsel %vm611, %v538, 0
  %v634 = vsel %vm611, %v539, 0
  %v637 = vsel %vm611, %v540, 0
  %v640 = vsel %vm611, %v541, 0
  %v643 = vsel %vm611, %v542, 0
  %v646 = vsel %vm611, %v543, 0
  %v649 = vsel %vm611, %v544, 0
  %v652 = vsel %vm611, %v545, 0
  %v655 = vsel %vm611, %v546, 0
  %v658 = vsel %vm611, %v547, 0
  %v661 = vsel %vm611, %v548, 0
  %v664 = vsel %vm611, %v549, 0
  %v667 = vsel %vm611, %v550, 0
  %v670 = vsel %vm611, %v551, 0
  %v673 = vsel %vm611, %v552, 0
  %v676 = vsel %vm611, %v553, 0
  %v679 = vsel %vm611, %v554, 0
  %v682 = vsel %vm611, %v555, 0
  %v685 = vsel %vm611, %v556, 0
  %v688 = vsel %vm611, %v557, 0
  %v691 = vsel %vm611, %v558, 0
  %v694 = vsel %vm611, %v559, 0
  %v697 = vsel %vm611, %v560, 0
  %v700 = vsel %vm611, %v561, 0
  %v703 = vsel %vm611, %v562, 0
  %v706 = vsel %vm611, %v563, 0
  %v709 = vsel %vm611, %v564, 0
  %v712 = vsel %vm611, %v565, 0
  %v715 = vsel %vm611, %v566, 0
  %v718 = vsel %vm611, %v567, 0
  %v721 = vsel %vm611, %v568, 0
  %v724 = vsel %vm611, %v569, 0
  %v727 = vsel %vm611, %v570, 0
  %v730 = vsel %vm611, %v571, 0
  %v733 = vsel %vm611, %v572, 0
  %v736 = vsel %vm611, %v573, 0
  %v739 = vsel %vm611, %v574, 0
  %v742 = vsel %vm611, %v575, 0
  %v745 = vsel %vm611, %v576, 0
  %v748 = vsel %vm611, %v577, 0
  %v751 = vsel %vm611, %v578, 0
  %v754 = vsel %vm611, %v579, 0
  %v757 = vsel %vm611, %v580, 0
  %v760 = vsel %vm611, %v581, 0
  %v763 = vsel %vm611, %v582, 0
  %v766 = vsel %vm611, %v583, 0
  %v769 = vsel %vm611, %v584, 0
  %v772 = vsel %vm611, %v585, 0
  %v775 = vsel %vm611, %v586, 0
  %v778 = vsel %vm611, %v587, 0
  %v781 = vsel %vm611, %v588, 0
  %v784 = vsel %vm611, %v589, 0
  %v787 = vsel %vm611, %v590, 0
  %v790 = vsel %vm611, %v591, 0
  %v793 = vsel %vm611, %v592, 0
  %v796 = vsel %vm611, %v593, 0
  %v799 = vsel %vm611, %v594, 0
  %v802 = vsel %vm611, %v595, 0
  %804 = vmatprep.subr.mxu0 0.0
  %805 = vmatpush1.msra.mxu0 %v600
  %806 = vmatprep.subr.mxu0 0.0
  %807 = vmatpush1.msra.mxu0 %v601
  %808 = vmatprep.subr.mxu0 0.0
  %809 = vmatpush1.msra.mxu0 %v602
  %810 = vmatprep.subr.mxu0 0.0
  %811 = vmatpush1.msra.mxu0 %v603
  %812 = vmatprep.subr.mxu0 0.0
  %813 = vmatpush1.msra.mxu0 0.0
  %814 = vmatprep.subr.mxu0 0.0
  %815 = vmatpush1.msra.mxu0 0.0
  %816 = vmatprep.subr.mxu0 0.0
  %817 = vmatpush1.msra.mxu0 0.0
  %818 = vmatprep.subr.mxu0 0.0
  %819 = vmatpush1.msra.mxu0 0.0
  %820 = vmatprep.subr.mxu0 0.0
  %821 = vmatpush1.msra.mxu0 0.0
  %822 = vmatprep.subr.mxu0 0.0
  %823 = vmatpush1.msra.mxu0 0.0
  %824 = vmatprep.subr.mxu0 0.0
  %825 = vmatpush1.msra.mxu0 0.0
  %826 = vmatprep.subr.mxu0 0.0
  %827 = vmatpush1.msra.mxu0 0.0
  %828 = vmatprep.subr.mxu0 0.0
  %829 = vmatpush1.msra.mxu0 0.0
  %830 = vmatprep.subr.mxu0 0.0
  %831 = vmatpush1.msra.mxu0 0.0
  %832 = vmatprep.subr.mxu0 0.0
  %833 = vmatpush1.msra.mxu0 0.0
  %834 = vmatprep.subr.mxu0 0.0
  %835 = vmatpush1.msra.mxu0 0.0
  %836 = vmatprep.subr.mxu0 0.0
  %837 = vmatpush1.msra.mxu0 0.0
  %838 = vmatprep.subr.mxu0 0.0
  %839 = vmatpush1.msra.mxu0 0.0
  %840 = vmatprep.subr.mxu0 0.0
  %841 = vmatpush1.msra.mxu0 0.0
  %842 = vmatprep.subr.mxu0 0.0
  %843 = vmatpush1.msra.mxu0 0.0
  %844 = vmatprep.subr.mxu0 0.0
  %845 = vmatpush1.msra.mxu0 0.0
  %846 = vmatprep.subr.mxu0 0.0
  %847 = vmatpush1.msra.mxu0 0.0
  %848 = vmatprep.subr.mxu0 0.0
  %849 = vmatpush1.msra.mxu0 0.0
  %850 = vmatprep.subr.mxu0 0.0
  %851 = vmatpush1.msra.mxu0 0.0
  %852 = vmatprep.subr.mxu0 0.0
  %853 = vmatpush1.msra.mxu0 0.0
  %854 = vmatprep.subr.mxu0 0.0
  %855 = vmatpush1.msra.mxu0 0.0
  %856 = vmatprep.subr.mxu0 0.0
  %857 = vmatpush1.msra.mxu0 0.0
  %858 = vmatprep.subr.mxu0 0.0
  %859 = vmatpush1.msra.mxu0 0.0
  %860 = vmatprep.subr.mxu0 0.0
  %861 = vmatpush1.msra.mxu0 0.0
  %862 = vmatprep.subr.mxu0 0.0
  %863 = vmatpush1.msra.mxu0 0.0
  %864 = vmatprep.subr.mxu0 0.0
  %865 = vmatpush1.msra.mxu0 0.0
  %866 = vmatprep.subr.mxu0 0.0
  %867 = vmatpush1.msra.mxu0 0.0
  %868 = vmatprep.mubr.f32.mxu0 0.0
  %869 = vmatmul.mubr.f32.gmra.mrb[0].mxu0 %v613
  %v870 = vpop.f32.mrb[0].mxu0
  %v871 = vadd.f32 %v609, %v870
  %v872 = vpop.f32.mrb[0].mxu0
  %873 = vmatprep.mubr.f32.mxu0 0.0
  %874 = vmatmul.mubr.f32.gmra.mrb[0].mxu0 %v616
  %v875 = vpop.f32.mrb[0].mxu0
  %v876 = vadd.f32 %v609, %v875
  %v877 = vpop.f32.mrb[0].mxu0
  %878 = vmatprep.mubr.f32.mxu0 0.0
  %879 = vmatmul.mubr.f32.gmra.mrb[0].mxu0 %v619
  %v880 = vpop.f32.mrb[0].mxu0
  %v881 = vadd.f32 %v609, %v880
  %v882 = vpop.f32.mrb[0].mxu0
  %883 = vmatprep.mubr.f32.mxu0 0.0
  %884 = vmatmul.mubr.f32.gmra.mrb[0].mxu0 %v622
  %v885 = vpop.f32.mrb[0].mxu0
  %v886 = vadd.f32 %v609, %v885
  %v887 = vpop.f32.mrb[0].mxu0
  %888 = vmatprep.mubr.f32.mxu0 0.0
  %889 = vmatmul.mubr.f32.gmra.mrb[0].mxu0 %v625
  %v890 = vpop.f32.mrb[0].mxu0
  %v891 = vadd.f32 %v609, %v890
  %v892 = vpop.f32.mrb[0].mxu0
  %893 = vmatprep.mubr.f32.mxu0 0.0
  %894 = vmatmul.mubr.f32.gmra.mrb[0].mxu0 %v628
  %v895 = vpop.f32.mrb[0].mxu0
  %v896 = vadd.f32 %v609, %v895
  %v897 = vpop.f32.mrb[0].mxu0
  %898 = vmatprep.mubr.f32.mxu0 0.0
  %899 = vmatmul.mubr.f32.gmra.mrb[0].mxu0 %v631
  %v900 = vpop.f32.mrb[0].mxu0
  %v901 = vadd.f32 %v609, %v900
  %v902 = vpop.f32.mrb[0].mxu0
  %903 = vmatprep.mubr.f32.mxu0 0.0
  %904 = vmatmul.mubr.f32.gmra.mrb[0].mxu0 %v634
  %v905 = vpop.f32.mrb[0].mxu0
  %v906 = vadd.f32 %v609, %v905
  %v907 = vpop.f32.mrb[0].mxu0
  %908 = vmatprep.mubr.f32.mxu0 0.0
  %909 = vmatmul.mubr.f32.gmra.mrb[0].mxu0 %v637
  %v910 = vpop.f32.mrb[0].mxu0
  %v911 = vadd.f32 %v609, %v910
  %v912 = vpop.f32.mrb[0].mxu0
  %913 = vmatprep.mubr.f32.mxu0 0.0
  %914 = vmatmul.mubr.f32.gmra.mrb[0].mxu0 %v640
  %v915 = vpop.f32.mrb[0].mxu0
  %v916 = vadd.f32 %v609, %v915
  %v917 = vpop.f32.mrb[0].mxu0
  %918 = vmatprep.mubr.f32.mxu0 0.0
  %919 = vmatmul.mubr.f32.gmra.mrb[0].mxu0 %v643
  %v920 = vpop.f32.mrb[0].mxu0
  %v921 = vadd.f32 %v609, %v920
  %v922 = vpop.f32.mrb[0].mxu0
  %923 = vmatprep.mubr.f32.mxu0 0.0
  %924 = vmatmul.mubr.f32.gmra.mrb[0].mxu0 %v646
  %v925 = vpop.f32.mrb[0].mxu0
  %v926 = vadd.f32 %v609, %v925
  %v927 = vpop.f32.mrb[0].mxu0
  %928 = vmatprep.mubr.f32.mxu0 0.0
  %929 = vmatmul.mubr.f32.gmra.mrb[0].mxu0 %v649
  %v930 = vpop.f32.mrb[0].mxu0
  %v931 = vadd.f32 %v609, %v930
  %v932 = vpop.f32.mrb[0].mxu0
  %933 = vmatprep.mubr.f32.mxu0 0.0
  %934 = vmatmul.mubr.f32.gmra.mrb[0].mxu0 %v652
  %v935 = vpop.f32.mrb[0].mxu0
  %v936 = vadd.f32 %v609, %v935
  %v937 = vpop.f32.mrb[0].mxu0
  %938 = vmatprep.mubr.f32.mxu0 0.0
  %939 = vmatmul.mubr.f32.gmra.mrb[0].mxu0 %v655
  %v940 = vpop.f32.mrb[0].mxu0
  %v941 = vadd.f32 %v609, %v940
  %v942 = vpop.f32.mrb[0].mxu0
  %943 = vmatprep.mubr.f32.mxu0 0.0
  %944 = vmatmul.mubr.f32.gmra.mrb[0].mxu0 %v658
  %v945 = vpop.f32.mrb[0].mxu0
  %v946 = vadd.f32 %v609, %v945
  %v947 = vpop.f32.mrb[0].mxu0
  %948 = vmatprep.mubr.f32.mxu0 0.0
  %949 = vmatmul.mubr.f32.gmra.mrb[0].mxu0 %v661
  %v950 = vpop.f32.mrb[0].mxu0
  %v951 = vadd.f32 %v609, %v950
  %v952 = vpop.f32.mrb[0].mxu0
  %953 = vmatprep.mubr.f32.mxu0 0.0
  %954 = vmatmul.mubr.f32.gmra.mrb[0].mxu0 %v664
  %v955 = vpop.f32.mrb[0].mxu0
  %v956 = vadd.f32 %v609, %v955
  %v957 = vpop.f32.mrb[0].mxu0
  %958 = vmatprep.mubr.f32.mxu0 0.0
  %959 = vmatmul.mubr.f32.gmra.mrb[0].mxu0 %v667
  %v960 = vpop.f32.mrb[0].mxu0
  %v961 = vadd.f32 %v609, %v960
  %v962 = vpop.f32.mrb[0].mxu0
  %963 = vmatprep.mubr.f32.mxu0 0.0
  %964 = vmatmul.mubr.f32.gmra.mrb[0].mxu0 %v670
  %v965 = vpop.f32.mrb[0].mxu0
  %v966 = vadd.f32 %v609, %v965
  %v967 = vpop.f32.mrb[0].mxu0
  %968 = vmatprep.mubr.f32.mxu0 0.0
  %969 = vmatmul.mubr.f32.gmra.mrb[0].mxu0 %v673
  %v970 = vpop.f32.mrb[0].mxu0
  %v971 = vadd.f32 %v609, %v970
  %v972 = vpop.f32.mrb[0].mxu0
  %973 = vmatprep.mubr.f32.mxu0 0.0
  %974 = vmatmul.mubr.f32.gmra.mrb[0].mxu0 %v676
  %v975 = vpop.f32.mrb[0].mxu0
  %v976 = vadd.f32 %v609, %v975
  %v977 = vpop.f32.mrb[0].mxu0
  %978 = vmatprep.mubr.f32.mxu0 0.0
  %979 = vmatmul.mubr.f32.gmra.mrb[0].mxu0 %v679
  %v980 = vpop.f32.mrb[0].mxu0
  %v981 = vadd.f32 %v609, %v980
  %v982 = vpop.f32.mrb[0].mxu0
  %983 = vmatprep.mubr.f32.mxu0 0.0
  %984 = vmatmul.mubr.f32.gmra.mrb[0].mxu0 %v682
  %v985 = vpop.f32.mrb[0].mxu0
  %v986 = vadd.f32 %v609, %v985
  %v987 = vpop.f32.mrb[0].mxu0
  %988 = vmatprep.mubr.f32.mxu0 0.0
  %989 = vmatmul.mubr.f32.gmra.mrb[0].mxu0 %v685
  %v990 = vpop.f32.mrb[0].mxu0
  %v991 = vadd.f32 %v609, %v990
  %v992 = vpop.f32.mrb[0].mxu0
  %993 = vmatprep.mubr.f32.mxu0 0.0
  %994 = vmatmul.mubr.f32.gmra.mrb[0].mxu0 %v688
  %v995 = vpop.f32.mrb[0].mxu0
  %v996 = vadd.f32 %v609, %v995
  %v997 = vpop.f32.mrb[0].mxu0
  %998 = vmatprep.mubr.f32.mxu0 0.0
  %999 = vmatmul.mubr.f32.gmra.mrb[0].mxu0 %v691
  %v1000 = vpop.f32.mrb[0].mxu0
  %v1001 = vadd.f32 %v609, %v1000
  %v1002 = vpop.f32.mrb[0].mxu0
  %1003 = vmatprep.mubr.f32.mxu0 0.0
  %1004 = vmatmul.mubr.f32.gmra.mrb[0].mxu0 %v694
  %v1005 = vpop.f32.mrb[0].mxu0
  %v1006 = vadd.f32 %v609, %v1005
  %v1007 = vpop.f32.mrb[0].mxu0
  %1008 = vmatprep.mubr.f32.mxu0 0.0
  %1009 = vmatmul.mubr.f32.gmra.mrb[0].mxu0 %v697
  %v1010 = vpop.f32.mrb[0].mxu0
  %v1011 = vadd.f32 %v609, %v1010
  %v1012 = vpop.f32.mrb[0].mxu0
  %1013 = vmatprep.mubr.f32.mxu0 0.0
  %1014 = vmatmul.mubr.f32.gmra.mrb[0].mxu0 %v700
  %v1015 = vpop.f32.mrb[0].mxu0
  %v1016 = vadd.f32 %v609, %v1015
  %v1017 = vpop.f32.mrb[0].mxu0
  %1018 = vmatprep.mubr.f32.mxu0 0.0
  %1019 = vmatmul.mubr.f32.gmra.mrb[0].mxu0 %v703
  %v1020 = vpop.f32.mrb[0].mxu0
  %v1021 = vadd.f32 %v609, %v1020
  %v1022 = vpop.f32.mrb[0].mxu0
  %1023 = vmatprep.mubr.f32.mxu0 0.0
  %1024 = vmatmul.mubr.f32.gmra.mrb[0].mxu0 %v706
  %v1025 = vpop.f32.mrb[0].mxu0
  %v1026 = vadd.f32 %v609, %v1025
  %v1027 = vpop.f32.mrb[0].mxu0
  %1028 = vmatprep.mubr.f32.mxu0 0.0
  %1029 = vmatmul.mubr.f32.gmra.mrb[0].mxu0 %v709
  %v1030 = vpop.f32.mrb[0].mxu0
  %v1031 = vadd.f32 %v609, %v1030
  %v1032 = vpop.f32.mrb[0].mxu0
  %1033 = vmatprep.mubr.f32.mxu0 0.0
  %1034 = vmatmul.mubr.f32.gmra.mrb[0].mxu0 %v712
  %v1035 = vpop.f32.mrb[0].mxu0
  %v1036 = vadd.f32 %v609, %v1035
  %v1037 = vpop.f32.mrb[0].mxu0
  %1038 = vmatprep.mubr.f32.mxu0 0.0
  %1039 = vmatmul.mubr.f32.gmra.mrb[0].mxu0 %v715
  %v1040 = vpop.f32.mrb[0].mxu0
  %v1041 = vadd.f32 %v609, %v1040
  %v1042 = vpop.f32.mrb[0].mxu0
  %1043 = vmatprep.mubr.f32.mxu0 0.0
  %1044 = vmatmul.mubr.f32.gmra.mrb[0].mxu0 %v718
  %v1045 = vpop.f32.mrb[0].mxu0
  %v1046 = vadd.f32 %v609, %v1045
  %v1047 = vpop.f32.mrb[0].mxu0
  %1048 = vmatprep.mubr.f32.mxu0 0.0
  %1049 = vmatmul.mubr.f32.gmra.mrb[0].mxu0 %v721
  %v1050 = vpop.f32.mrb[0].mxu0
  %v1051 = vadd.f32 %v609, %v1050
  %v1052 = vpop.f32.mrb[0].mxu0
  %1053 = vmatprep.mubr.f32.mxu0 0.0
  %1054 = vmatmul.mubr.f32.gmra.mrb[0].mxu0 %v724
  %v1055 = vpop.f32.mrb[0].mxu0
  %v1056 = vadd.f32 %v609, %v1055
  %v1057 = vpop.f32.mrb[0].mxu0
  %1058 = vmatprep.mubr.f32.mxu0 0.0
  %1059 = vmatmul.mubr.f32.gmra.mrb[0].mxu0 %v727
  %v1060 = vpop.f32.mrb[0].mxu0
  %v1061 = vadd.f32 %v609, %v1060
  %v1062 = vpop.f32.mrb[0].mxu0
  %1063 = vmatprep.mubr.f32.mxu0 0.0
  %1064 = vmatmul.mubr.f32.gmra.mrb[0].mxu0 %v730
  %v1065 = vpop.f32.mrb[0].mxu0
  %v1066 = vadd.f32 %v609, %v1065
  %v1067 = vpop.f32.mrb[0].mxu0
  %1068 = vmatprep.mubr.f32.mxu0 0.0
  %1069 = vmatmul.mubr.f32.gmra.mrb[0].mxu0 %v733
  %v1070 = vpop.f32.mrb[0].mxu0
  %v1071 = vadd.f32 %v609, %v1070
  %v1072 = vpop.f32.mrb[0].mxu0
  %1073 = vmatprep.mubr.f32.mxu0 0.0
  %1074 = vmatmul.mubr.f32.gmra.mrb[0].mxu0 %v736
  %v1075 = vpop.f32.mrb[0].mxu0
  %v1076 = vadd.f32 %v609, %v1075
  %v1077 = vpop.f32.mrb[0].mxu0
  %1078 = vmatprep.mubr.f32.mxu0 0.0
  %1079 = vmatmul.mubr.f32.gmra.mrb[0].mxu0 %v739
  %v1080 = vpop.f32.mrb[0].mxu0
  %v1081 = vadd.f32 %v609, %v1080
  %v1082 = vpop.f32.mrb[0].mxu0
  %1083 = vmatprep.mubr.f32.mxu0 0.0
  %1084 = vmatmul.mubr.f32.gmra.mrb[0].mxu0 %v742
  %v1085 = vpop.f32.mrb[0].mxu0
  %v1086 = vadd.f32 %v609, %v1085
  %v1087 = vpop.f32.mrb[0].mxu0
  %1088 = vmatprep.mubr.f32.mxu0 0.0
  %1089 = vmatmul.mubr.f32.gmra.mrb[0].mxu0 %v745
  %v1090 = vpop.f32.mrb[0].mxu0
  %v1091 = vadd.f32 %v609, %v1090
  %v1092 = vpop.f32.mrb[0].mxu0
  %1093 = vmatprep.mubr.f32.mxu0 0.0
  %1094 = vmatmul.mubr.f32.gmra.mrb[0].mxu0 %v748
  %v1095 = vpop.f32.mrb[0].mxu0
  %v1096 = vadd.f32 %v609, %v1095
  %v1097 = vpop.f32.mrb[0].mxu0
  %1098 = vmatprep.mubr.f32.mxu0 0.0
  %1099 = vmatmul.mubr.f32.gmra.mrb[0].mxu0 %v751
  %v1100 = vpop.f32.mrb[0].mxu0
  %v1101 = vadd.f32 %v609, %v1100
  %v1102 = vpop.f32.mrb[0].mxu0
  %1103 = vmatprep.mubr.f32.mxu0 0.0
  %1104 = vmatmul.mubr.f32.gmra.mrb[0].mxu0 %v754
  %v1105 = vpop.f32.mrb[0].mxu0
  %v1106 = vadd.f32 %v609, %v1105
  %v1107 = vpop.f32.mrb[0].mxu0
  %1108 = vmatprep.mubr.f32.mxu0 0.0
  %1109 = vmatmul.mubr.f32.gmra.mrb[0].mxu0 %v757
  %v1110 = vpop.f32.mrb[0].mxu0
  %v1111 = vadd.f32 %v609, %v1110
  %v1112 = vpop.f32.mrb[0].mxu0
  %1113 = vmatprep.mubr.f32.mxu0 0.0
  %1114 = vmatmul.mubr.f32.gmra.mrb[0].mxu0 %v760
  %v1115 = vpop.f32.mrb[0].mxu0
  %v1116 = vadd.f32 %v609, %v1115
  %v1117 = vpop.f32.mrb[0].mxu0
  %1118 = vmatprep.mubr.f32.mxu0 0.0
  %1119 = vmatmul.mubr.f32.gmra.mrb[0].mxu0 %v763
  %v1120 = vpop.f32.mrb[0].mxu0
  %v1121 = vadd.f32 %v609, %v1120
  %v1122 = vpop.f32.mrb[0].mxu0
  %1123 = vmatprep.mubr.f32.mxu0 0.0
  %1124 = vmatmul.mubr.f32.gmra.mrb[0].mxu0 %v766
  %v1125 = vpop.f32.mrb[0].mxu0
  %v1126 = vadd.f32 %v609, %v1125
  %v1127 = vpop.f32.mrb[0].mxu0
  %1128 = vmatprep.mubr.f32.mxu0 0.0
  %1129 = vmatmul.mubr.f32.gmra.mrb[0].mxu0 %v769
  %v1130 = vpop.f32.mrb[0].mxu0
  %v1131 = vadd.f32 %v609, %v1130
  %v1132 = vpop.f32.mrb[0].mxu0
  %1133 = vmatprep.mubr.f32.mxu0 0.0
  %1134 = vmatmul.mubr.f32.gmra.mrb[0].mxu0 %v772
  %v1135 = vpop.f32.mrb[0].mxu0
  %v1136 = vadd.f32 %v609, %v1135
  %v1137 = vpop.f32.mrb[0].mxu0
  %1138 = vmatprep.mubr.f32.mxu0 0.0
  %1139 = vmatmul.mubr.f32.gmra.mrb[0].mxu0 %v775
  %v1140 = vpop.f32.mrb[0].mxu0
  %v1141 = vadd.f32 %v609, %v1140
  %v1142 = vpop.f32.mrb[0].mxu0
  %1143 = vmatprep.mubr.f32.mxu0 0.0
  %1144 = vmatmul.mubr.f32.gmra.mrb[0].mxu0 %v778
  %v1145 = vpop.f32.mrb[0].mxu0
  %v1146 = vadd.f32 %v609, %v1145
  %v1147 = vpop.f32.mrb[0].mxu0
  %1148 = vmatprep.mubr.f32.mxu0 0.0
  %1149 = vmatmul.mubr.f32.gmra.mrb[0].mxu0 %v781
  %v1150 = vpop.f32.mrb[0].mxu0
  %v1151 = vadd.f32 %v609, %v1150
  %v1152 = vpop.f32.mrb[0].mxu0
  %1153 = vmatprep.mubr.f32.mxu0 0.0
  %1154 = vmatmul.mubr.f32.gmra.mrb[0].mxu0 %v784
  %v1155 = vpop.f32.mrb[0].mxu0
  %v1156 = vadd.f32 %v609, %v1155
  %v1157 = vpop.f32.mrb[0].mxu0
  %1158 = vmatprep.mubr.f32.mxu0 0.0
  %1159 = vmatmul.mubr.f32.gmra.mrb[0].mxu0 %v787
  %v1160 = vpop.f32.mrb[0].mxu0
  %v1161 = vadd.f32 %v609, %v1160
  %v1162 = vpop.f32.mrb[0].mxu0
  %1163 = vmatprep.mubr.f32.mxu0 0.0
  %1164 = vmatmul.mubr.f32.gmra.mrb[0].mxu0 %v790
  %v1165 = vpop.f32.mrb[0].mxu0
  %v1166 = vadd.f32 %v609, %v1165
  %v1167 = vpop.f32.mrb[0].mxu0
  %1168 = vmatprep.mubr.f32.mxu0 0.0
  %1169 = vmatmul.mubr.f32.gmra.mrb[0].mxu0 %v793
  %v1170 = vpop.f32.mrb[0].mxu0
  %v1171 = vadd.f32 %v609, %v1170
  %v1172 = vpop.f32.mrb[0].mxu0
  %1173 = vmatprep.mubr.f32.mxu0 0.0
  %1174 = vmatmul.mubr.f32.gmra.mrb[0].mxu0 %v796
  %v1175 = vpop.f32.mrb[0].mxu0
  %v1176 = vadd.f32 %v609, %v1175
  %v1177 = vpop.f32.mrb[0].mxu0
  %1178 = vmatprep.mubr.f32.mxu0 0.0
  %1179 = vmatmul.mubr.f32.gmra.mrb[0].mxu0 %v799
  %v1180 = vpop.f32.mrb[0].mxu0
  %v1181 = vadd.f32 %v609, %v1180
  %v1182 = vpop.f32.mrb[0].mxu0
  %1183 = vmatprep.mubr.f32.mxu0 0.0
  %1184 = vmatmul.mubr.f32.gmra.mrb[0].mxu0 %v802
  %v1185 = vpop.f32.mrb[0].mxu0
  %v1186 = vadd.f32 %v609, %v1185
  %v1187 = vpop.f32.mrb[0].mxu0
  %1188 = vdwg.mxu0
  %v1189 = vmax.f32 %v871, 0.0
  %v1190 = vmax.f32 %v876, 0.0
  %v1191 = vmax.f32 %v881, 0.0
  %v1192 = vmax.f32 %v886, 0.0
  %v1193 = vmax.f32 %v891, 0.0
  %v1194 = vmax.f32 %v896, 0.0
  %v1195 = vmax.f32 %v901, 0.0
  %v1196 = vmax.f32 %v906, 0.0
  %v1197 = vmax.f32 %v911, 0.0
  %v1198 = vmax.f32 %v916, 0.0
  %v1199 = vmax.f32 %v921, 0.0
  %v1200 = vmax.f32 %v926, 0.0
  %v1201 = vmax.f32 %v931, 0.0
  %v1202 = vmax.f32 %v936, 0.0
  %v1203 = vmax.f32 %v941, 0.0
  %v1204 = vmax.f32 %v946, 0.0
  %v1205 = vmax.f32 %v951, 0.0
  %v1206 = vmax.f32 %v956, 0.0
  %v1207 = vmax.f32 %v961, 0.0
  %v1208 = vmax.f32 %v966, 0.0
  %v1209 = vmax.f32 %v971, 0.0
  %v1210 = vmax.f32 %v976, 0.0
  %v1211 = vmax.f32 %v981, 0.0
  %v1212 = vmax.f32 %v986, 0.0
  %v1213 = vmax.f32 %v991, 0.0
  %v1214 = vmax.f32 %v996, 0.0
  %v1215 = vmax.f32 %v1001, 0.0
  %v1216 = vmax.f32 %v1006, 0.0
  %v1217 = vmax.f32 %v1011, 0.0
  %v1218 = vmax.f32 %v1016, 0.0
  %v1219 = vmax.f32 %v1021, 0.0
  %v1220 = vmax.f32 %v1026, 0.0
  %v1221 = vmax.f32 %v1031, 0.0
  %v1222 = vmax.f32 %v1036, 0.0
  %v1223 = vmax.f32 %v1041, 0.0
  %v1224 = vmax.f32 %v1046, 0.0
  %v1225 = vmax.f32 %v1051, 0.0
  %v1226 = vmax.f32 %v1056, 0.0
  %v1227 = vmax.f32 %v1061, 0.0
  %v1228 = vmax.f32 %v1066, 0.0
  %v1229 = vmax.f32 %v1071, 0.0
  %v1230 = vmax.f32 %v1076, 0.0
  %v1231 = vmax.f32 %v1081, 0.0
  %v1232 = vmax.f32 %v1086, 0.0
  %v1233 = vmax.f32 %v1091, 0.0
  %v1234 = vmax.f32 %v1096, 0.0
  %v1235 = vmax.f32 %v1101, 0.0
  %v1236 = vmax.f32 %v1106, 0.0
  %v1237 = vmax.f32 %v1111, 0.0
  %v1238 = vmax.f32 %v1116, 0.0
  %v1239 = vmax.f32 %v1121, 0.0
  %v1240 = vmax.f32 %v1126, 0.0
  %v1241 = vmax.f32 %v1131, 0.0
  %v1242 = vmax.f32 %v1136, 0.0
  %v1243 = vmax.f32 %v1141, 0.0
  %v1244 = vmax.f32 %v1146, 0.0
  %v1245 = vmax.f32 %v1151, 0.0
  %v1246 = vmax.f32 %v1156, 0.0
  %v1247 = vmax.f32 %v1161, 0.0
  %v1248 = vmax.f32 %v1166, 0.0
  %v1249 = vmax.f32 %v1171, 0.0
  %v1250 = vmax.f32 %v1176, 0.0
  %v1251 = vmax.f32 %v1181, 0.0
  %v1252 = vmax.f32 %v1186, 0.0
  %v1253 = vld [vmem:[%s5] sm:$0xf]
  %v1254 = vld [vmem:[%s5 + $0x4] sm:$0xf]
  %v1255 = vld [vmem:[%s5 + $0x8] sm:$0xf]
  %v1256 = vld [vmem:[%s5 + $0xc] sm:$0xf]
  %v1257 = vunpack.c.l.bf16 %v1253
  %v1258 = vunpack.c.l.bf16 %v1254
  %v1259 = vunpack.c.l.bf16 %v1255
  %v1260 = vunpack.c.l.bf16 %v1256
  %v1261 = vld [vmem:[%s6] sm:$0x1]
  %v1263 = vlaneseq
  %v1264 = vshrl.u32 %v1263, 7
  %v1265 = vsub.s32 0, %v1264
  %v1266 = vrot.slane %v1261, %v1265
  %v1269 = vsel %vm611, %v1189, 0
  %v1272 = vsel %vm611, %v1190, 0
  %v1275 = vsel %vm611, %v1191, 0
  %v1278 = vsel %vm611, %v1192, 0
  %v1281 = vsel %vm611, %v1193, 0
  %v1284 = vsel %vm611, %v1194, 0
  %v1287 = vsel %vm611, %v1195, 0
  %v1290 = vsel %vm611, %v1196, 0
  %v1293 = vsel %vm611, %v1197, 0
  %v1296 = vsel %vm611, %v1198, 0
  %v1299 = vsel %vm611, %v1199, 0
  %v1302 = vsel %vm611, %v1200, 0
  %v1305 = vsel %vm611, %v1201, 0
  %v1308 = vsel %vm611, %v1202, 0
  %v1311 = vsel %vm611, %v1203, 0
  %v1314 = vsel %vm611, %v1204, 0
  %v1317 = vsel %vm611, %v1205, 0
  %v1320 = vsel %vm611, %v1206, 0
  %v1323 = vsel %vm611, %v1207, 0
  %v1326 = vsel %vm611, %v1208, 0
  %v1329 = vsel %vm611, %v1209, 0
  %v1332 = vsel %vm611, %v1210, 0
  %v1335 = vsel %vm611, %v1211, 0
  %v1338 = vsel %vm611, %v1212, 0
  %v1341 = vsel %vm611, %v1213, 0
  %v1344 = vsel %vm611, %v1214, 0
  %v1347 = vsel %vm611, %v1215, 0
  %v1350 = vsel %vm611, %v1216, 0
  %v1353 = vsel %vm611, %v1217, 0
  %v1356 = vsel %vm611, %v1218, 0
  %v1359 = vsel %vm611, %v1219, 0
  %v1362 = vsel %vm611, %v1220, 0
  %v1365 = vsel %vm611, %v1221, 0
  %v1368 = vsel %vm611, %v1222, 0
  %v1371 = vsel %vm611, %v1223, 0
  %v1374 = vsel %vm611, %v1224, 0
  %v1377 = vsel %vm611, %v1225, 0
  %v1380 = vsel %vm611, %v1226, 0
  %v1383 = vsel %vm611, %v1227, 0
  %v1386 = vsel %vm611, %v1228, 0
  %v1389 = vsel %vm611, %v1229, 0
  %v1392 = vsel %vm611, %v1230, 0
  %v1395 = vsel %vm611, %v1231, 0
  %v1398 = vsel %vm611, %v1232, 0
  %v1401 = vsel %vm611, %v1233, 0
  %v1404 = vsel %vm611, %v1234, 0
  %v1407 = vsel %vm611, %v1235, 0
  %v1410 = vsel %vm611, %v1236, 0
  %v1413 = vsel %vm611, %v1237, 0
  %v1416 = vsel %vm611, %v1238, 0
  %v1419 = vsel %vm611, %v1239, 0
  %v1422 = vsel %vm611, %v1240, 0
  %v1425 = vsel %vm611, %v1241, 0
  %v1428 = vsel %vm611, %v1242, 0
  %v1431 = vsel %vm611, %v1243, 0
  %v1434 = vsel %vm611, %v1244, 0
  %v1437 = vsel %vm611, %v1245, 0
  %v1440 = vsel %vm611, %v1246, 0
  %v1443 = vsel %vm611, %v1247, 0
  %v1446 = vsel %vm611, %v1248, 0
  %v1449 = vsel %vm611, %v1249, 0
  %v1452 = vsel %vm611, %v1250, 0
  %v1455 = vsel %vm611, %v1251, 0
  %v1458 = vsel %vm611, %v1252, 0
  %1460 = vmatprep.subr.mxu0 0.0
  %1461 = vmatpush1.msra.mxu0 %v1257
  %1462 = vmatprep.subr.mxu0 0.0
  %1463 = vmatpush1.msra.mxu0 %v1258
  %1464 = vmatprep.subr.mxu0 0.0
  %1465 = vmatpush1.msra.mxu0 %v1259
  %1466 = vmatprep.subr.mxu0 0.0
  %1467 = vmatpush1.msra.mxu0 %v1260
  %1468 = vmatprep.subr.mxu0 0.0
  %1469 = vmatpush1.msra.mxu0 0.0
  %1470 = vmatprep.subr.mxu0 0.0
  %1471 = vmatpush1.msra.mxu0 0.0
  %1472 = vmatprep.subr.mxu0 0.0
  %1473 = vmatpush1.msra.mxu0 0.0
  %1474 = vmatprep.subr.mxu0 0.0
  %1475 = vmatpush1.msra.mxu0 0.0
  %1476 = vmatprep.subr.mxu0 0.0
  %1477 = vmatpush1.msra.mxu0 0.0
  %1478 = vmatprep.subr.mxu0 0.0
  %1479 = vmatpush1.msra.mxu0 0.0
  %1480 = vmatprep.subr.mxu0 0.0
  %1481 = vmatpush1.msra.mxu0 0.0
  %1482 = vmatprep.subr.mxu0 0.0
  %1483 = vmatpush1.msra.mxu0 0.0
  %1484 = vmatprep.subr.mxu0 0.0
  %1485 = vmatpush1.msra.mxu0 0.0
  %1486 = vmatprep.subr.mxu0 0.0
  %1487 = vmatpush1.msra.mxu0 0.0
  %1488 = vmatprep.subr.mxu0 0.0
  %1489 = vmatpush1.msra.mxu0 0.0
  %1490 = vmatprep.subr.mxu0 0.0
  %1491 = vmatpush1.msra.mxu0 0.0
  %1492 = vmatprep.subr.mxu0 0.0
  %1493 = vmatpush1.msra.mxu0 0.0
  %1494 = vmatprep.subr.mxu0 0.0
  %1495 = vmatpush1.msra.mxu0 0.0
  %1496 = vmatprep.subr.mxu0 0.0
  %1497 = vmatpush1.msra.mxu0 0.0
  %1498 = vmatprep.subr.mxu0 0.0
  %1499 = vmatpush1.msra.mxu0 0.0
  %1500 = vmatprep.subr.mxu0 0.0
  %1501 = vmatpush1.msra.mxu0 0.0
  %1502 = vmatprep.subr.mxu0 0.0
  %1503 = vmatpush1.msra.mxu0 0.0
  %1504 = vmatprep.subr.mxu0 0.0
  %1505 = vmatpush1.msra.mxu0 0.0
  %1506 = vmatprep.subr.mxu0 0.0
  %1507 = vmatpush1.msra.mxu0 0.0
  %1508 = vmatprep.subr.mxu0 0.0
  %1509 = vmatpush1.msra.mxu0 0.0
  %1510 = vmatprep.subr.mxu0 0.0
  %1511 = vmatpush1.msra.mxu0 0.0
  %1512 = vmatprep.subr.mxu0 0.0
  %1513 = vmatpush1.msra.mxu0 0.0
  %1514 = vmatprep.subr.mxu0 0.0
  %1515 = vmatpush1.msra.mxu0 0.0
  %1516 = vmatprep.subr.mxu0 0.0
  %1517 = vmatpush1.msra.mxu0 0.0
  %1518 = vmatprep.subr.mxu0 0.0
  %1519 = vmatpush1.msra.mxu0 0.0
  %1520 = vmatprep.subr.mxu0 0.0
  %1521 = vmatpush1.msra.mxu0 0.0
  %1522 = vmatprep.subr.mxu0 0.0
  %1523 = vmatpush1.msra.mxu0 0.0
  %1524 = vmatprep.mubr.f32.mxu0 0.0
  %1525 = vmatmul.mubr.f32.gmra.mrb[0].mxu0 %v1269
  %v1526 = vpop.f32.mrb[0].mxu0
  %v1527 = vadd.f32 %v1266, %v1526
  %v1528 = vpop.f32.mrb[0].mxu0
  %1529 = vmatprep.mubr.f32.mxu0 0.0
  %1530 = vmatmul.mubr.f32.gmra.mrb[0].mxu0 %v1272
  %v1531 = vpop.f32.mrb[0].mxu0
  %v1532 = vadd.f32 %v1266, %v1531
  %v1533 = vpop.f32.mrb[0].mxu0
  %1534 = vmatprep.mubr.f32.mxu0 0.0
  %1535 = vmatmul.mubr.f32.gmra.mrb[0].mxu0 %v1275
  %v1536 = vpop.f32.mrb[0].mxu0
  %v1537 = vadd.f32 %v1266, %v1536
  %v1538 = vpop.f32.mrb[0].mxu0
  %1539 = vmatprep.mubr.f32.mxu0 0.0
  %1540 = vmatmul.mubr.f32.gmra.mrb[0].mxu0 %v1278
  %v1541 = vpop.f32.mrb[0].mxu0
  %v1542 = vadd.f32 %v1266, %v1541
  %v1543 = vpop.f32.mrb[0].mxu0
  %1544 = vmatprep.mubr.f32.mxu0 0.0
  %1545 = vmatmul.mubr.f32.gmra.mrb[0].mxu0 %v1281
  %v1546 = vpop.f32.mrb[0].mxu0
  %v1547 = vadd.f32 %v1266, %v1546
  %v1548 = vpop.f32.mrb[0].mxu0
  %1549 = vmatprep.mubr.f32.mxu0 0.0
  %1550 = vmatmul.mubr.f32.gmra.mrb[0].mxu0 %v1284
  %v1551 = vpop.f32.mrb[0].mxu0
  %v1552 = vadd.f32 %v1266, %v1551
  %v1553 = vpop.f32.mrb[0].mxu0
  %1554 = vmatprep.mubr.f32.mxu0 0.0
  %1555 = vmatmul.mubr.f32.gmra.mrb[0].mxu0 %v1287
  %v1556 = vpop.f32.mrb[0].mxu0
  %v1557 = vadd.f32 %v1266, %v1556
  %v1558 = vpop.f32.mrb[0].mxu0
  %1559 = vmatprep.mubr.f32.mxu0 0.0
  %1560 = vmatmul.mubr.f32.gmra.mrb[0].mxu0 %v1290
  %v1561 = vpop.f32.mrb[0].mxu0
  %v1562 = vadd.f32 %v1266, %v1561
  %v1563 = vpop.f32.mrb[0].mxu0
  %1564 = vmatprep.mubr.f32.mxu0 0.0
  %1565 = vmatmul.mubr.f32.gmra.mrb[0].mxu0 %v1293
  %v1566 = vpop.f32.mrb[0].mxu0
  %v1567 = vadd.f32 %v1266, %v1566
  %v1568 = vpop.f32.mrb[0].mxu0
  %1569 = vmatprep.mubr.f32.mxu0 0.0
  %1570 = vmatmul.mubr.f32.gmra.mrb[0].mxu0 %v1296
  %v1571 = vpop.f32.mrb[0].mxu0
  %v1572 = vadd.f32 %v1266, %v1571
  %v1573 = vpop.f32.mrb[0].mxu0
  %1574 = vmatprep.mubr.f32.mxu0 0.0
  %1575 = vmatmul.mubr.f32.gmra.mrb[0].mxu0 %v1299
  %v1576 = vpop.f32.mrb[0].mxu0
  %v1577 = vadd.f32 %v1266, %v1576
  %v1578 = vpop.f32.mrb[0].mxu0
  %1579 = vmatprep.mubr.f32.mxu0 0.0
  %1580 = vmatmul.mubr.f32.gmra.mrb[0].mxu0 %v1302
  %v1581 = vpop.f32.mrb[0].mxu0
  %v1582 = vadd.f32 %v1266, %v1581
  %v1583 = vpop.f32.mrb[0].mxu0
  %1584 = vmatprep.mubr.f32.mxu0 0.0
  %1585 = vmatmul.mubr.f32.gmra.mrb[0].mxu0 %v1305
  %v1586 = vpop.f32.mrb[0].mxu0
  %v1587 = vadd.f32 %v1266, %v1586
  %v1588 = vpop.f32.mrb[0].mxu0
  %1589 = vmatprep.mubr.f32.mxu0 0.0
  %1590 = vmatmul.mubr.f32.gmra.mrb[0].mxu0 %v1308
  %v1591 = vpop.f32.mrb[0].mxu0
  %v1592 = vadd.f32 %v1266, %v1591
  %v1593 = vpop.f32.mrb[0].mxu0
  %1594 = vmatprep.mubr.f32.mxu0 0.0
  %1595 = vmatmul.mubr.f32.gmra.mrb[0].mxu0 %v1311
  %v1596 = vpop.f32.mrb[0].mxu0
  %v1597 = vadd.f32 %v1266, %v1596
  %v1598 = vpop.f32.mrb[0].mxu0
  %1599 = vmatprep.mubr.f32.mxu0 0.0
  %1600 = vmatmul.mubr.f32.gmra.mrb[0].mxu0 %v1314
  %v1601 = vpop.f32.mrb[0].mxu0
  %v1602 = vadd.f32 %v1266, %v1601
  %v1603 = vpop.f32.mrb[0].mxu0
  %1604 = vmatprep.mubr.f32.mxu0 0.0
  %1605 = vmatmul.mubr.f32.gmra.mrb[0].mxu0 %v1317
  %v1606 = vpop.f32.mrb[0].mxu0
  %v1607 = vadd.f32 %v1266, %v1606
  %v1608 = vpop.f32.mrb[0].mxu0
  %1609 = vmatprep.mubr.f32.mxu0 0.0
  %1610 = vmatmul.mubr.f32.gmra.mrb[0].mxu0 %v1320
  %v1611 = vpop.f32.mrb[0].mxu0
  %v1612 = vadd.f32 %v1266, %v1611
  %v1613 = vpop.f32.mrb[0].mxu0
  %1614 = vmatprep.mubr.f32.mxu0 0.0
  %1615 = vmatmul.mubr.f32.gmra.mrb[0].mxu0 %v1323
  %v1616 = vpop.f32.mrb[0].mxu0
  %v1617 = vadd.f32 %v1266, %v1616
  %v1618 = vpop.f32.mrb[0].mxu0
  %1619 = vmatprep.mubr.f32.mxu0 0.0
  %1620 = vmatmul.mubr.f32.gmra.mrb[0].mxu0 %v1326
  %v1621 = vpop.f32.mrb[0].mxu0
  %v1622 = vadd.f32 %v1266, %v1621
  %v1623 = vpop.f32.mrb[0].mxu0
  %1624 = vmatprep.mubr.f32.mxu0 0.0
  %1625 = vmatmul.mubr.f32.gmra.mrb[0].mxu0 %v1329
  %v1626 = vpop.f32.mrb[0].mxu0
  %v1627 = vadd.f32 %v1266, %v1626
  %v1628 = vpop.f32.mrb[0].mxu0
  %1629 = vmatprep.mubr.f32.mxu0 0.0
  %1630 = vmatmul.mubr.f32.gmra.mrb[0].mxu0 %v1332
  %v1631 = vpop.f32.mrb[0].mxu0
  %v1632 = vadd.f32 %v1266, %v1631
  %v1633 = vpop.f32.mrb[0].mxu0
  %1634 = vmatprep.mubr.f32.mxu0 0.0
  %1635 = vmatmul.mubr.f32.gmra.mrb[0].mxu0 %v1335
  %v1636 = vpop.f32.mrb[0].mxu0
  %v1637 = vadd.f32 %v1266, %v1636
  %v1638 = vpop.f32.mrb[0].mxu0
  %1639 = vmatprep.mubr.f32.mxu0 0.0
  %1640 = vmatmul.mubr.f32.gmra.mrb[0].mxu0 %v1338
  %v1641 = vpop.f32.mrb[0].mxu0
  %v1642 = vadd.f32 %v1266, %v1641
  %v1643 = vpop.f32.mrb[0].mxu0
  %1644 = vmatprep.mubr.f32.mxu0 0.0
  %1645 = vmatmul.mubr.f32.gmra.mrb[0].mxu0 %v1341
  %v1646 = vpop.f32.mrb[0].mxu0
  %v1647 = vadd.f32 %v1266, %v1646
  %v1648 = vpop.f32.mrb[0].mxu0
  %1649 = vmatprep.mubr.f32.mxu0 0.0
  %1650 = vmatmul.mubr.f32.gmra.mrb[0].mxu0 %v1344
  %v1651 = vpop.f32.mrb[0].mxu0
  %v1652 = vadd.f32 %v1266, %v1651
  %v1653 = vpop.f32.mrb[0].mxu0
  %1654 = vmatprep.mubr.f32.mxu0 0.0
  %1655 = vmatmul.mubr.f32.gmra.mrb[0].mxu0 %v1347
  %v1656 = vpop.f32.mrb[0].mxu0
  %v1657 = vadd.f32 %v1266, %v1656
  %v1658 = vpop.f32.mrb[0].mxu0
  %1659 = vmatprep.mubr.f32.mxu0 0.0
  %1660 = vmatmul.mubr.f32.gmra.mrb[0].mxu0 %v1350
  %v1661 = vpop.f32.mrb[0].mxu0
  %v1662 = vadd.f32 %v1266, %v1661
  %v1663 = vpop.f32.mrb[0].mxu0
  %1664 = vmatprep.mubr.f32.mxu0 0.0
  %1665 = vmatmul.mubr.f32.gmra.mrb[0].mxu0 %v1353
  %v1666 = vpop.f32.mrb[0].mxu0
  %v1667 = vadd.f32 %v1266, %v1666
  %v1668 = vpop.f32.mrb[0].mxu0
  %1669 = vmatprep.mubr.f32.mxu0 0.0
  %1670 = vmatmul.mubr.f32.gmra.mrb[0].mxu0 %v1356
  %v1671 = vpop.f32.mrb[0].mxu0
  %v1672 = vadd.f32 %v1266, %v1671
  %v1673 = vpop.f32.mrb[0].mxu0
  %1674 = vmatprep.mubr.f32.mxu0 0.0
  %1675 = vmatmul.mubr.f32.gmra.mrb[0].mxu0 %v1359
  %v1676 = vpop.f32.mrb[0].mxu0
  %v1677 = vadd.f32 %v1266, %v1676
  %v1678 = vpop.f32.mrb[0].mxu0
  %1679 = vmatprep.mubr.f32.mxu0 0.0
  %1680 = vmatmul.mubr.f32.gmra.mrb[0].mxu0 %v1362
  %v1681 = vpop.f32.mrb[0].mxu0
  %v1682 = vadd.f32 %v1266, %v1681
  %v1683 = vpop.f32.mrb[0].mxu0
  %1684 = vmatprep.mubr.f32.mxu0 0.0
  %1685 = vmatmul.mubr.f32.gmra.mrb[0].mxu0 %v1365
  %v1686 = vpop.f32.mrb[0].mxu0
  %v1687 = vadd.f32 %v1266, %v1686
  %v1688 = vpop.f32.mrb[0].mxu0
  %1689 = vmatprep.mubr.f32.mxu0 0.0
  %1690 = vmatmul.mubr.f32.gmra.mrb[0].mxu0 %v1368
  %v1691 = vpop.f32.mrb[0].mxu0
  %v1692 = vadd.f32 %v1266, %v1691
  %v1693 = vpop.f32.mrb[0].mxu0
  %1694 = vmatprep.mubr.f32.mxu0 0.0
  %1695 = vmatmul.mubr.f32.gmra.mrb[0].mxu0 %v1371
  %v1696 = vpop.f32.mrb[0].mxu0
  %v1697 = vadd.f32 %v1266, %v1696
  %v1698 = vpop.f32.mrb[0].mxu0
  %1699 = vmatprep.mubr.f32.mxu0 0.0
  %1700 = vmatmul.mubr.f32.gmra.mrb[0].mxu0 %v1374
  %v1701 = vpop.f32.mrb[0].mxu0
  %v1702 = vadd.f32 %v1266, %v1701
  %v1703 = vpop.f32.mrb[0].mxu0
  %1704 = vmatprep.mubr.f32.mxu0 0.0
  %1705 = vmatmul.mubr.f32.gmra.mrb[0].mxu0 %v1377
  %v1706 = vpop.f32.mrb[0].mxu0
  %v1707 = vadd.f32 %v1266, %v1706
  %v1708 = vpop.f32.mrb[0].mxu0
  %1709 = vmatprep.mubr.f32.mxu0 0.0
  %1710 = vmatmul.mubr.f32.gmra.mrb[0].mxu0 %v1380
  %v1711 = vpop.f32.mrb[0].mxu0
  %v1712 = vadd.f32 %v1266, %v1711
  %v1713 = vpop.f32.mrb[0].mxu0
  %1714 = vmatprep.mubr.f32.mxu0 0.0
  %1715 = vmatmul.mubr.f32.gmra.mrb[0].mxu0 %v1383
  %v1716 = vpop.f32.mrb[0].mxu0
  %v1717 = vadd.f32 %v1266, %v1716
  %v1718 = vpop.f32.mrb[0].mxu0
  %1719 = vmatprep.mubr.f32.mxu0 0.0
  %1720 = vmatmul.mubr.f32.gmra.mrb[0].mxu0 %v1386
  %v1721 = vpop.f32.mrb[0].mxu0
  %v1722 = vadd.f32 %v1266, %v1721
  %v1723 = vpop.f32.mrb[0].mxu0
  %1724 = vmatprep.mubr.f32.mxu0 0.0
  %1725 = vmatmul.mubr.f32.gmra.mrb[0].mxu0 %v1389
  %v1726 = vpop.f32.mrb[0].mxu0
  %v1727 = vadd.f32 %v1266, %v1726
  %v1728 = vpop.f32.mrb[0].mxu0
  %1729 = vmatprep.mubr.f32.mxu0 0.0
  %1730 = vmatmul.mubr.f32.gmra.mrb[0].mxu0 %v1392
  %v1731 = vpop.f32.mrb[0].mxu0
  %v1732 = vadd.f32 %v1266, %v1731
  %v1733 = vpop.f32.mrb[0].mxu0
  %1734 = vmatprep.mubr.f32.mxu0 0.0
  %1735 = vmatmul.mubr.f32.gmra.mrb[0].mxu0 %v1395
  %v1736 = vpop.f32.mrb[0].mxu0
  %v1737 = vadd.f32 %v1266, %v1736
  %v1738 = vpop.f32.mrb[0].mxu0
  %1739 = vmatprep.mubr.f32.mxu0 0.0
  %1740 = vmatmul.mubr.f32.gmra.mrb[0].mxu0 %v1398
  %v1741 = vpop.f32.mrb[0].mxu0
  %v1742 = vadd.f32 %v1266, %v1741
  %v1743 = vpop.f32.mrb[0].mxu0
  %1744 = vmatprep.mubr.f32.mxu0 0.0
  %1745 = vmatmul.mubr.f32.gmra.mrb[0].mxu0 %v1401
  %v1746 = vpop.f32.mrb[0].mxu0
  %v1747 = vadd.f32 %v1266, %v1746
  %v1748 = vpop.f32.mrb[0].mxu0
  %1749 = vmatprep.mubr.f32.mxu0 0.0
  %1750 = vmatmul.mubr.f32.gmra.mrb[0].mxu0 %v1404
  %v1751 = vpop.f32.mrb[0].mxu0
  %v1752 = vadd.f32 %v1266, %v1751
  %v1753 = vpop.f32.mrb[0].mxu0
  %1754 = vmatprep.mubr.f32.mxu0 0.0
  %1755 = vmatmul.mubr.f32.gmra.mrb[0].mxu0 %v1407
  %v1756 = vpop.f32.mrb[0].mxu0
  %v1757 = vadd.f32 %v1266, %v1756
  %v1758 = vpop.f32.mrb[0].mxu0
  %1759 = vmatprep.mubr.f32.mxu0 0.0
  %1760 = vmatmul.mubr.f32.gmra.mrb[0].mxu0 %v1410
  %v1761 = vpop.f32.mrb[0].mxu0
  %v1762 = vadd.f32 %v1266, %v1761
  %v1763 = vpop.f32.mrb[0].mxu0
  %1764 = vmatprep.mubr.f32.mxu0 0.0
  %1765 = vmatmul.mubr.f32.gmra.mrb[0].mxu0 %v1413
  %v1766 = vpop.f32.mrb[0].mxu0
  %v1767 = vadd.f32 %v1266, %v1766
  %v1768 = vpop.f32.mrb[0].mxu0
  %1769 = vmatprep.mubr.f32.mxu0 0.0
  %1770 = vmatmul.mubr.f32.gmra.mrb[0].mxu0 %v1416
  %v1771 = vpop.f32.mrb[0].mxu0
  %v1772 = vadd.f32 %v1266, %v1771
  %v1773 = vpop.f32.mrb[0].mxu0
  %1774 = vmatprep.mubr.f32.mxu0 0.0
  %1775 = vmatmul.mubr.f32.gmra.mrb[0].mxu0 %v1419
  %v1776 = vpop.f32.mrb[0].mxu0
  %v1777 = vadd.f32 %v1266, %v1776
  %v1778 = vpop.f32.mrb[0].mxu0
  %1779 = vmatprep.mubr.f32.mxu0 0.0
  %1780 = vmatmul.mubr.f32.gmra.mrb[0].mxu0 %v1422
  %v1781 = vpop.f32.mrb[0].mxu0
  %v1782 = vadd.f32 %v1266, %v1781
  %v1783 = vpop.f32.mrb[0].mxu0
  %1784 = vmatprep.mubr.f32.mxu0 0.0
  %1785 = vmatmul.mubr.f32.gmra.mrb[0].mxu0 %v1425
  %v1786 = vpop.f32.mrb[0].mxu0
  %v1787 = vadd.f32 %v1266, %v1786
  %v1788 = vpop.f32.mrb[0].mxu0
  %1789 = vmatprep.mubr.f32.mxu0 0.0
  %1790 = vmatmul.mubr.f32.gmra.mrb[0].mxu0 %v1428
  %v1791 = vpop.f32.mrb[0].mxu0
  %v1792 = vadd.f32 %v1266, %v1791
  %v1793 = vpop.f32.mrb[0].mxu0
  %1794 = vmatprep.mubr.f32.mxu0 0.0
  %1795 = vmatmul.mubr.f32.gmra.mrb[0].mxu0 %v1431
  %v1796 = vpop.f32.mrb[0].mxu0
  %v1797 = vadd.f32 %v1266, %v1796
  %v1798 = vpop.f32.mrb[0].mxu0
  %1799 = vmatprep.mubr.f32.mxu0 0.0
  %1800 = vmatmul.mubr.f32.gmra.mrb[0].mxu0 %v1434
  %v1801 = vpop.f32.mrb[0].mxu0
  %v1802 = vadd.f32 %v1266, %v1801
  %v1803 = vpop.f32.mrb[0].mxu0
  %1804 = vmatprep.mubr.f32.mxu0 0.0
  %1805 = vmatmul.mubr.f32.gmra.mrb[0].mxu0 %v1437
  %v1806 = vpop.f32.mrb[0].mxu0
  %v1807 = vadd.f32 %v1266, %v1806
  %v1808 = vpop.f32.mrb[0].mxu0
  %1809 = vmatprep.mubr.f32.mxu0 0.0
  %1810 = vmatmul.mubr.f32.gmra.mrb[0].mxu0 %v1440
  %v1811 = vpop.f32.mrb[0].mxu0
  %v1812 = vadd.f32 %v1266, %v1811
  %v1813 = vpop.f32.mrb[0].mxu0
  %1814 = vmatprep.mubr.f32.mxu0 0.0
  %1815 = vmatmul.mubr.f32.gmra.mrb[0].mxu0 %v1443
  %v1816 = vpop.f32.mrb[0].mxu0
  %v1817 = vadd.f32 %v1266, %v1816
  %v1818 = vpop.f32.mrb[0].mxu0
  %1819 = vmatprep.mubr.f32.mxu0 0.0
  %1820 = vmatmul.mubr.f32.gmra.mrb[0].mxu0 %v1446
  %v1821 = vpop.f32.mrb[0].mxu0
  %v1822 = vadd.f32 %v1266, %v1821
  %v1823 = vpop.f32.mrb[0].mxu0
  %1824 = vmatprep.mubr.f32.mxu0 0.0
  %1825 = vmatmul.mubr.f32.gmra.mrb[0].mxu0 %v1449
  %v1826 = vpop.f32.mrb[0].mxu0
  %v1827 = vadd.f32 %v1266, %v1826
  %v1828 = vpop.f32.mrb[0].mxu0
  %1829 = vmatprep.mubr.f32.mxu0 0.0
  %1830 = vmatmul.mubr.f32.gmra.mrb[0].mxu0 %v1452
  %v1831 = vpop.f32.mrb[0].mxu0
  %v1832 = vadd.f32 %v1266, %v1831
  %v1833 = vpop.f32.mrb[0].mxu0
  %1834 = vmatprep.mubr.f32.mxu0 0.0
  %1835 = vmatmul.mubr.f32.gmra.mrb[0].mxu0 %v1455
  %v1836 = vpop.f32.mrb[0].mxu0
  %v1837 = vadd.f32 %v1266, %v1836
  %v1838 = vpop.f32.mrb[0].mxu0
  %1839 = vmatprep.mubr.f32.mxu0 0.0
  %1840 = vmatmul.mubr.f32.gmra.mrb[0].mxu0 %v1458
  %v1841 = vpop.f32.mrb[0].mxu0
  %v1842 = vadd.f32 %v1266, %v1841
  %v1843 = vpop.f32.mrb[0].mxu0
  %1844 = vdwg.mxu0
  %vm1845 = vcmask 15360
  %1846 = vst.msk [vmem:[%s7] sm:$0xff] %vm1845, %v1527
  %1847 = vst.msk [vmem:[%s7 + $0x8] sm:$0xff] %vm1845, %v1532
  %1848 = vst.msk [vmem:[%s7 + $0x10] sm:$0xff] %vm1845, %v1537
  %1849 = vst.msk [vmem:[%s7 + $0x18] sm:$0xff] %vm1845, %v1542
  %1850 = vst.msk [vmem:[%s7 + $0x20] sm:$0xff] %vm1845, %v1547
  %1851 = vst.msk [vmem:[%s7 + $0x28] sm:$0xff] %vm1845, %v1552
  %1852 = vst.msk [vmem:[%s7 + $0x30] sm:$0xff] %vm1845, %v1557
  %1853 = vst.msk [vmem:[%s7 + $0x38] sm:$0xff] %vm1845, %v1562
  %1854 = vst.msk [vmem:[%s7 + $0x40] sm:$0xff] %vm1845, %v1567
  %1855 = vst.msk [vmem:[%s7 + $0x48] sm:$0xff] %vm1845, %v1572
  %1856 = vst.msk [vmem:[%s7 + $0x50] sm:$0xff] %vm1845, %v1577
  %1857 = vst.msk [vmem:[%s7 + $0x58] sm:$0xff] %vm1845, %v1582
  %1858 = vst.msk [vmem:[%s7 + $0x60] sm:$0xff] %vm1845, %v1587
  %1859 = vst.msk [vmem:[%s7 + $0x68] sm:$0xff] %vm1845, %v1592
  %1860 = vst.msk [vmem:[%s7 + $0x70] sm:$0xff] %vm1845, %v1597
  %1861 = vst.msk [vmem:[%s7 + $0x78] sm:$0xff] %vm1845, %v1602
  %1862 = vst.msk [vmem:[%s7 + $0x80] sm:$0xff] %vm1845, %v1607
  %1863 = vst.msk [vmem:[%s7 + $0x88] sm:$0xff] %vm1845, %v1612
  %1864 = vst.msk [vmem:[%s7 + $0x90] sm:$0xff] %vm1845, %v1617
  %1865 = vst.msk [vmem:[%s7 + $0x98] sm:$0xff] %vm1845, %v1622
  %1866 = vst.msk [vmem:[%s7 + $0xa0] sm:$0xff] %vm1845, %v1627
  %1867 = vst.msk [vmem:[%s7 + $0xa8] sm:$0xff] %vm1845, %v1632
  %1868 = vst.msk [vmem:[%s7 + $0xb0] sm:$0xff] %vm1845, %v1637
  %1869 = vst.msk [vmem:[%s7 + $0xb8] sm:$0xff] %vm1845, %v1642
  %1870 = vst.msk [vmem:[%s7 + $0xc0] sm:$0xff] %vm1845, %v1647
  %1871 = vst.msk [vmem:[%s7 + $0xc8] sm:$0xff] %vm1845, %v1652
  %1872 = vst.msk [vmem:[%s7 + $0xd0] sm:$0xff] %vm1845, %v1657
  %1873 = vst.msk [vmem:[%s7 + $0xd8] sm:$0xff] %vm1845, %v1662
  %1874 = vst.msk [vmem:[%s7 + $0xe0] sm:$0xff] %vm1845, %v1667
  %1875 = vst.msk [vmem:[%s7 + $0xe8] sm:$0xff] %vm1845, %v1672
  %1876 = vst.msk [vmem:[%s7 + $0xf0] sm:$0xff] %vm1845, %v1677
  %1877 = vst.msk [vmem:[%s7 + $0xf8] sm:$0xff] %vm1845, %v1682
  %1878 = vst.msk [vmem:[%s7 + $0x100] sm:$0xff] %vm1845, %v1687
  %1879 = vst.msk [vmem:[%s7 + $0x108] sm:$0xff] %vm1845, %v1692
  %1880 = vst.msk [vmem:[%s7 + $0x110] sm:$0xff] %vm1845, %v1697
  %1881 = vst.msk [vmem:[%s7 + $0x118] sm:$0xff] %vm1845, %v1702
  %1882 = vst.msk [vmem:[%s7 + $0x120] sm:$0xff] %vm1845, %v1707
  %1883 = vst.msk [vmem:[%s7 + $0x128] sm:$0xff] %vm1845, %v1712
  %1884 = vst.msk [vmem:[%s7 + $0x130] sm:$0xff] %vm1845, %v1717
  %1885 = vst.msk [vmem:[%s7 + $0x138] sm:$0xff] %vm1845, %v1722
  %1886 = vst.msk [vmem:[%s7 + $0x140] sm:$0xff] %vm1845, %v1727
  %1887 = vst.msk [vmem:[%s7 + $0x148] sm:$0xff] %vm1845, %v1732
  %1888 = vst.msk [vmem:[%s7 + $0x150] sm:$0xff] %vm1845, %v1737
  %1889 = vst.msk [vmem:[%s7 + $0x158] sm:$0xff] %vm1845, %v1742
  %1890 = vst.msk [vmem:[%s7 + $0x160] sm:$0xff] %vm1845, %v1747
  %1891 = vst.msk [vmem:[%s7 + $0x168] sm:$0xff] %vm1845, %v1752
  %1892 = vst.msk [vmem:[%s7 + $0x170] sm:$0xff] %vm1845, %v1757
  %1893 = vst.msk [vmem:[%s7 + $0x178] sm:$0xff] %vm1845, %v1762
  %1894 = vst.msk [vmem:[%s7 + $0x180] sm:$0xff] %vm1845, %v1767
  %1895 = vst.msk [vmem:[%s7 + $0x188] sm:$0xff] %vm1845, %v1772
  %1896 = vst.msk [vmem:[%s7 + $0x190] sm:$0xff] %vm1845, %v1777
  %1897 = vst.msk [vmem:[%s7 + $0x198] sm:$0xff] %vm1845, %v1782
  %1898 = vst.msk [vmem:[%s7 + $0x1a0] sm:$0xff] %vm1845, %v1787
  %1899 = vst.msk [vmem:[%s7 + $0x1a8] sm:$0xff] %vm1845, %v1792
  %1900 = vst.msk [vmem:[%s7 + $0x1b0] sm:$0xff] %vm1845, %v1797
  %1901 = vst.msk [vmem:[%s7 + $0x1b8] sm:$0xff] %vm1845, %v1802
  %1902 = vst.msk [vmem:[%s7 + $0x1c0] sm:$0xff] %vm1845, %v1807
  %1903 = vst.msk [vmem:[%s7 + $0x1c8] sm:$0xff] %vm1845, %v1812
  %1904 = vst.msk [vmem:[%s7 + $0x1d0] sm:$0xff] %vm1845, %v1817
  %1905 = vst.msk [vmem:[%s7 + $0x1d8] sm:$0xff] %vm1845, %v1822
  %1906 = vst.msk [vmem:[%s7 + $0x1e0] sm:$0xff] %vm1845, %v1827
  %1907 = vst.msk [vmem:[%s7 + $0x1e8] sm:$0xff] %vm1845, %v1832
  %1908 = vst.msk [vmem:[%s7 + $0x1f0] sm:$0xff] %vm1845, %v1837
  %1909 = vst.msk [vmem:[%s7 + $0x1f8] sm:$0xff] %vm1845, %v1842
  // Predicated region
  $region30: #{mlp_forward.1} parent=0 // pred_check
    _
  $region31: #{mlp_forward.1} parent=0 // pred_check_branch
    %1911 = sbr.rel (0) target = $region33
  $region32: #{mlp_forward.1} parent=0 // pred_region
    _
  $region33: #{mlp_forward.1} parent=0 // pred_fallthru
    _
  // Predicated region
  $region34: #{mlp_forward.1} parent=0 // pred_check
    _
  $region35: #{mlp_forward.1} parent=0 // pred_check_branch
    %1913 = sbr.rel (0) target = $region37
  $region36: #{mlp_forward.1} parent=0 // pred_region
    _
  $region37: #{mlp_forward.1} parent=0 // pred_fallthru
    _

</llo_original>
